<compile_context>
chip_gen: v7x
topology: tpu7x:2x2x1
jax: 0.10.0
libtpu: 0.0.40
codegen_flags: <defaults>
</compile_context>

<pallas_src>
import jax
import jax.numpy as jnp
from jax.experimental import pallas as pl
from jax.experimental.pallas import tpu as pltpu

EMB = 200          # embedding_size (fc1 expects 6 * 200 = 1200 inputs)
N_IN = 6           # number of embedding inputs concatenated into fc1
HID1 = 128
HID2 = 64
NUM_CLASSES = 5
PAD_N = 128        # lane-dense padded class width


def ncf_mlp_kernel(idx_ref, folded_ref, w2_ref, w3_ref, bias_ref, o_ref):
    """In-kernel embedding gather (one-hot matmul over W1-folded tables),
    then fc2 -> relu -> fc3 -> masked softmax, per batch tile."""
    bvals = bias_ref[...]                      # (3, 128) f32
    b1 = bvals[0:1, :]                         # (1, 128)
    b2 = bvals[1:2, :HID2]                     # (1, 64)
    b3 = bvals[2:3, :]                         # (1, 128); cols >= 5 are -1e30

    idx = idx_ref[...]                         # (TB, 6) int32
    tb = idx.shape[0]
    rows_pad = folded_ref.shape[1]
    row_iota = jax.lax.broadcasted_iota(jnp.int32, (tb, rows_pad), 1)

    # fc1: concat + W1 folded into per-input tables; gather via one-hot matmul.
    h1 = None
    for i in range(N_IN):
        oh = (row_iota == idx[:, i:i + 1]).astype(jnp.float32)   # (TB, rows_pad)
        contrib = jnp.dot(oh, folded_ref[i],
                          preferred_element_type=jnp.float32)    # (TB, 128) f32
        h1 = contrib if h1 is None else h1 + contrib
    h1 = jnp.maximum(h1 + b1, 0.0)                               # (TB, 128) f32

    h2 = jnp.dot(h1.astype(jnp.bfloat16), w2_ref[...],
                 preferred_element_type=jnp.float32)
    h2 = jnp.maximum(h2 + b2, 0.0)                               # (TB, 64) f32

    logits = jnp.dot(h2.astype(jnp.bfloat16), w3_ref[...],
                     preferred_element_type=jnp.float32) + b3    # (TB, 128) f32

    # Softmax over the 5 real classes; padded lanes carry -1e30 via the bias.
    m = jnp.max(logits, axis=-1, keepdims=True)
    e = jnp.exp(logits - m)
    denom = jnp.sum(e, axis=-1, keepdims=True)
    o_ref[...] = (e * pl.reciprocal(denom, approx=True)).astype(o_ref.dtype)


@jax.jit
def ncf_forward(params, u1, u2, u3, u4, u5, mv):
    """Only the tiny int32 indices cross HBM per row; all gathers + MLP +
    softmax run in the kernel against VMEM-resident folded tables/weights."""
    B = u1.shape[0]
    idx = jnp.stack([u1, u2, u3, u4, u5, mv], axis=1).astype(jnp.int32)  # (B, 6)

    # v6e/v7x: 256 fills the 256x256 MXU; keep >= 2 tiles so megacore can
    # split the "parallel" axis across both TCs.  v5e's 128x128 MXU is
    # already full at 128 (small batches land there anyway).
    tb = 256 if pl.cdiv(B, 256) >= 2 else 128
    num_tiles = pl.cdiv(B, tb)
    bp = num_tiles * tb
    if bp != B:
        # Pad only the tiny index array (index 0 -> valid row -> finite rows,
        # sliced away below).  No activation slabs are padded/copied.
        idx = jnp.pad(idx, ((0, bp - B), (0, 0)))

    rows_pad = params["folded"].shape[1]

    flops = 2 * bp * (N_IN * rows_pad * HID1 + HID1 * HID2 + HID2 * PAD_N)
    bytes_accessed = (idx.size * 4 + params["folded"].size * 4
                      + params["w2"].size * 2 + params["w3"].size * 2
                      + params["bias"].size * 4 + bp * PAD_N * 2)
    cost = pl.CostEstimate(flops=flops, transcendentals=bp * PAD_N,
                           bytes_accessed=bytes_accessed)

    out_pad = pl.pallas_call(
        ncf_mlp_kernel,
        out_shape=jax.ShapeDtypeStruct((bp, PAD_N), jnp.bfloat16),
        grid=(num_tiles,),
        in_specs=[
            pl.BlockSpec((tb, N_IN), lambda i: (i, 0)),              # indices
            pl.BlockSpec((N_IN, rows_pad, HID1), lambda i: (0, 0, 0)),  # folded tables
            pl.BlockSpec((HID1, HID2), lambda i: (0, 0)),            # w2
            pl.BlockSpec((HID2, PAD_N), lambda i: (0, 0)),           # w3 (padded)
            pl.BlockSpec((3, PAD_N), lambda i: (0, 0)),              # packed biases
        ],
        out_specs=pl.BlockSpec((tb, PAD_N), lambda i: (i, 0)),
        compiler_params=pltpu.CompilerParams(
            dimension_semantics=("parallel",)),
        cost_estimate=cost,
    )(idx, params["folded"], params["w2"], params["w3"], params["bias"])

    return out_pad[:B, :NUM_CLASSES].astype(jnp.float32)


def ncf_reference(params, u1, u2, u3, u4, u5, mv):
    """Pure-JAX reference (f32 activations, f32 W1, same bf16 W2/W3 upcast)."""
    e1 = params["user_embedding1"][u1]
    e2 = params["user_embedding2"][u2]
    e3 = params["user_embedding2"][u3]
    e4 = params["user_embedding2"][u4]
    e5 = params["user_embedding2"][u5]
    em = params["movie_embedding"][mv]
    x = jnp.concatenate([e1, e2, e3, e4, e5, em], axis=1)        # (B, 1200)
    w1 = params["w1"]                                            # f32 (1200, 128)
    w2 = params["w2"].astype(jnp.float32)
    w3 = params["w3"].astype(jnp.float32)[:, :NUM_CLASSES]
    b1 = params["bias"][0, :HID1]
    b2 = params["bias"][1, :HID2]
    b3 = params["bias"][2, :NUM_CLASSES]
    h1 = jnp.maximum(x @ w1 + b1, 0.0)
    h2 = jnp.maximum(h1 @ w2 + b2, 0.0)
    return jax.nn.softmax(h2 @ w3 + b3, axis=-1)


def init_params(key, embedding_dim, embedding_size=EMB):
    """Deterministic init mirroring PyTorch defaults (N(0,1) embeddings,
    U(-1/sqrt(fan_in), 1/sqrt(fan_in)) for Linear weights/biases), plus
    kernel-friendly layouts (W1 folded into the gathered tables)."""
    keys = jax.random.split(key, 12)
    hid_in = embedding_size * N_IN

    def lin(kw, kb, fan_in, fan_out):
        bound = 1.0 / (float(fan_in) ** 0.5)
        w = jax.random.uniform(kw, (fan_in, fan_out), jnp.float32, -bound, bound)
        b = jax.random.uniform(kb, (fan_out,), jnp.float32, -bound, bound)
        return w, b

    w1, b1 = lin(keys[6], keys[7], hid_in, HID1)          # (1200, 128)
    w2, b2 = lin(keys[8], keys[9], HID1, HID2)            # (128, 64)
    w3, b3 = lin(keys[10], keys[11], HID2, NUM_CLASSES)   # (64, 5)

    emb_names = ["user_embedding1", "user_embedding2", "user_embedding3",
                 "user_embedding4", "user_embedding5", "movie_embedding"]
    emb = {name: jax.random.normal(keys[i], (embedding_dim, embedding_size),
                                   jnp.float32)
           for i, name in enumerate(emb_names)}

    # --- kernel-friendly layouts ---------------------------------------
    rows_pad = -(-embedding_dim // 8) * 8                 # sublane-align rows
    w1_slices = w1.reshape(N_IN, embedding_size, HID1)
    # forward() reuses user_embedding2 for inputs 2..5 (module "bug", kept).
    tables = [emb["user_embedding1"], emb["user_embedding2"],
              emb["user_embedding2"], emb["user_embedding2"],
              emb["user_embedding2"], emb["movie_embedding"]]
    folded = jnp.stack([t @ w1_slices[i] for i, t in enumerate(tables)])
    folded = jnp.pad(folded, ((0, 0), (0, rows_pad - embedding_dim), (0, 0)))

    w3_pad = jnp.zeros((HID2, PAD_N), jnp.float32).at[:, :NUM_CLASSES].set(w3)
    bias = jnp.zeros((3, PAD_N), jnp.float32)
    bias = bias.at[0, :HID1].set(b1)
    bias = bias.at[1, :HID2].set(b2)
    bias = bias.at[2, :].set(-1e30)                       # bake class mask
    bias = bias.at[2, :NUM_CLASSES].set(b3)

    params = dict(emb)
    params.update({
        "w1": w1,                                  # f32 (reference only)
        "folded": folded,                          # (6, rows_pad, 128) f32
        "w2": w2.astype(jnp.bfloat16),             # (128, 64) bf16
        "w3": w3_pad.astype(jnp.bfloat16),         # (64, 128) bf16, lane-padded
        "bias": bias,                              # (3, 128) f32, packed + mask
    })
    return params


if __name__ == "__main__":
    embedding_dim = 50       # rows in each embedding table
    batch = 256              # 2 grid tiles of 128 rows (megacore-friendly)

    key = jax.random.PRNGKey(0)
    params = init_params(key, embedding_dim, EMB)

    idx_key = jax.random.fold_in(key, 123)
    idx_keys = jax.random.split(idx_key, 6)
    u1, u2, u3, u4, u5, mv = [
        jax.random.randint(k, (batch,), 0, embedding_dim, dtype=jnp.int32)
        for k in idx_keys
    ]

    out = ncf_forward(params, u1, u2, u3, u4, u5, mv)
    out = jax.block_until_ready(out)
    ref = ncf_reference(params, u1, u2, u3, u4, u5, mv)

    assert out.shape == (batch, NUM_CLASSES)
    assert bool(jnp.isfinite(out).all())
    # approx reciprocal + bf16 output: rows sum to 1 to ~3e-3
    assert bool(jnp.all(jnp.abs(out.sum(axis=-1) - 1.0) < 1e-2))
    assert bool(jnp.allclose(out, ref, rtol=5e-2, atol=2e-2))
    print("KERNEL_OK")
</pallas_src>

<mosaic_0001>
module attributes {stable_mosaic.version = 11 : i64} {
  func.func @ncf_mlp_kernel(%arg0: i32, %arg1: memref<128x6xi32, #tpu.memory_space<vmem>>, %arg2: memref<6x56x128xf32, #tpu.memory_space<vmem>>, %arg3: memref<128x64xbf16, #tpu.memory_space<vmem>>, %arg4: memref<64x128xbf16, #tpu.memory_space<vmem>>, %arg5: memref<3x128xf32, #tpu.memory_space<vmem>>, %arg6: memref<128x128xbf16, #tpu.memory_space<vmem>>) attributes {dimension_semantics = [#tpu.dimension_semantics<parallel>], iteration_bounds = array<i64: 2>, scalar_prefetch = 0 : i64, scratch_operands = 0 : i64, tpu.core_type = #tpu.core_type<tc>, window_params = [{transform_indices = @transform_0, window_bounds = array<i64: 128, 6>}, {pipeline_mode = #tpu.pipeline_mode<synchronous>, transform_indices = @transform_1, window_bounds = array<i64: 6, 56, 128>}, {pipeline_mode = #tpu.pipeline_mode<synchronous>, transform_indices = @transform_2, window_bounds = array<i64: 128, 64>}, {pipeline_mode = #tpu.pipeline_mode<synchronous>, transform_indices = @transform_3, window_bounds = array<i64: 64, 128>}, {pipeline_mode = #tpu.pipeline_mode<synchronous>, transform_indices = @transform_4, window_bounds = array<i64: 3, 128>}, {transform_indices = @transform_5, window_bounds = array<i64: 128, 128>}]} {
    %c0 = arith.constant 0 : index
    %c0_0 = arith.constant 0 : index
    %0 = vector.load %arg5[%c0, %c0_0] : memref<3x128xf32, #tpu.memory_space<vmem>>, vector<3x128xf32>
    %1 = vector.extract_strided_slice %0 {offsets = [0, 0], sizes = [1, 128], strides = [1, 1]} : vector<3x128xf32> to vector<1x128xf32>
    %2 = vector.extract_strided_slice %0 {offsets = [1, 0], sizes = [1, 64], strides = [1, 1]} : vector<3x128xf32> to vector<1x64xf32>
    %3 = vector.extract_strided_slice %0 {offsets = [2, 0], sizes = [1, 128], strides = [1, 1]} : vector<3x128xf32> to vector<1x128xf32>
    %c0_1 = arith.constant 0 : index
    %c0_2 = arith.constant 0 : index
    %4 = vector.load %arg1[%c0_1, %c0_2] : memref<128x6xi32, #tpu.memory_space<vmem>>, vector<128x6xi32>
    %5 = tpu.iota {dimensions = array<i32: 1>} : vector<128x56xi32>
    %6 = vector.extract_strided_slice %4 {offsets = [0, 0], sizes = [128, 1], strides = [1, 1]} : vector<128x6xi32> to vector<128x1xi32>
    %7 = vector.broadcast %6 : vector<128x1xi32> to vector<128x56xi32>
    %8 = arith.cmpi eq, %5, %7 : vector<128x56xi32>
    %9 = arith.extui %8 : vector<128x56xi1> to vector<128x56xi32>
    %10 = arith.sitofp %9 : vector<128x56xi32> to vector<128x56xf32>
    %c0_3 = arith.constant 0 : index
    %c0_4 = arith.constant 0 : index
    %c0_5 = arith.constant 0 : index
    %11 = vector.load %arg2[%c0_3, %c0_4, %c0_5] : memref<6x56x128xf32, #tpu.memory_space<vmem>>, vector<1x56x128xf32>
    %12 = vector.shape_cast %11 : vector<1x56x128xf32> to vector<56x128xf32>
    %cst = arith.constant dense<0.000000e+00> : vector<128x128xf32>
    %13 = tpu.matmul %10, %12, %cst {dimension_numbers = #tpu.dot_dimension_numbers<[1], [0], [0], [1], [0, 0, 1, 1], [], []>} : vector<128x56xf32>, vector<56x128xf32>, vector<128x128xf32> -> vector<128x128xf32>
    %14 = vector.extract_strided_slice %4 {offsets = [0, 1], sizes = [128, 1], strides = [1, 1]} : vector<128x6xi32> to vector<128x1xi32>
    %15 = vector.broadcast %14 : vector<128x1xi32> to vector<128x56xi32>
    %16 = arith.cmpi eq, %5, %15 : vector<128x56xi32>
    %17 = arith.extui %16 : vector<128x56xi1> to vector<128x56xi32>
    %18 = arith.sitofp %17 : vector<128x56xi32> to vector<128x56xf32>
    %c1 = arith.constant 1 : index
    %c0_6 = arith.constant 0 : index
    %c0_7 = arith.constant 0 : index
    %19 = vector.load %arg2[%c1, %c0_6, %c0_7] : memref<6x56x128xf32, #tpu.memory_space<vmem>>, vector<1x56x128xf32>
    %20 = vector.shape_cast %19 : vector<1x56x128xf32> to vector<56x128xf32>
    %cst_8 = arith.constant dense<0.000000e+00> : vector<128x128xf32>
    %21 = tpu.matmul %18, %20, %cst_8 {dimension_numbers = #tpu.dot_dimension_numbers<[1], [0], [0], [1], [0, 0, 1, 1], [], []>} : vector<128x56xf32>, vector<56x128xf32>, vector<128x128xf32> -> vector<128x128xf32>
    %22 = arith.addf %13, %21 : vector<128x128xf32>
    %23 = vector.extract_strided_slice %4 {offsets = [0, 2], sizes = [128, 1], strides = [1, 1]} : vector<128x6xi32> to vector<128x1xi32>
    %24 = vector.broadcast %23 : vector<128x1xi32> to vector<128x56xi32>
    %25 = arith.cmpi eq, %5, %24 : vector<128x56xi32>
    %26 = arith.extui %25 : vector<128x56xi1> to vector<128x56xi32>
    %27 = arith.sitofp %26 : vector<128x56xi32> to vector<128x56xf32>
    %c2 = arith.constant 2 : index
    %c0_9 = arith.constant 0 : index
    %c0_10 = arith.constant 0 : index
    %28 = vector.load %arg2[%c2, %c0_9, %c0_10] : memref<6x56x128xf32, #tpu.memory_space<vmem>>, vector<1x56x128xf32>
    %29 = vector.shape_cast %28 : vector<1x56x128xf32> to vector<56x128xf32>
    %cst_11 = arith.constant dense<0.000000e+00> : vector<128x128xf32>
    %30 = tpu.matmul %27, %29, %cst_11 {dimension_numbers = #tpu.dot_dimension_numbers<[1], [0], [0], [1], [0, 0, 1, 1], [], []>} : vector<128x56xf32>, vector<56x128xf32>, vector<128x128xf32> -> vector<128x128xf32>
    %31 = arith.addf %22, %30 : vector<128x128xf32>
    %32 = vector.extract_strided_slice %4 {offsets = [0, 3], sizes = [128, 1], strides = [1, 1]} : vector<128x6xi32> to vector<128x1xi32>
    %33 = vector.broadcast %32 : vector<128x1xi32> to vector<128x56xi32>
    %34 = arith.cmpi eq, %5, %33 : vector<128x56xi32>
    %35 = arith.extui %34 : vector<128x56xi1> to vector<128x56xi32>
    %36 = arith.sitofp %35 : vector<128x56xi32> to vector<128x56xf32>
    %c3 = arith.constant 3 : index
    %c0_12 = arith.constant 0 : index
    %c0_13 = arith.constant 0 : index
    %37 = vector.load %arg2[%c3, %c0_12, %c0_13] : memref<6x56x128xf32, #tpu.memory_space<vmem>>, vector<1x56x128xf32>
    %38 = vector.shape_cast %37 : vector<1x56x128xf32> to vector<56x128xf32>
    %cst_14 = arith.constant dense<0.000000e+00> : vector<128x128xf32>
    %39 = tpu.matmul %36, %38, %cst_14 {dimension_numbers = #tpu.dot_dimension_numbers<[1], [0], [0], [1], [0, 0, 1, 1], [], []>} : vector<128x56xf32>, vector<56x128xf32>, vector<128x128xf32> -> vector<128x128xf32>
    %40 = arith.addf %31, %39 : vector<128x128xf32>
    %41 = vector.extract_strided_slice %4 {offsets = [0, 4], sizes = [128, 1], strides = [1, 1]} : vector<128x6xi32> to vector<128x1xi32>
    %42 = vector.broadcast %41 : vector<128x1xi32> to vector<128x56xi32>
    %43 = arith.cmpi eq, %5, %42 : vector<128x56xi32>
    %44 = arith.extui %43 : vector<128x56xi1> to vector<128x56xi32>
    %45 = arith.sitofp %44 : vector<128x56xi32> to vector<128x56xf32>
    %c4 = arith.constant 4 : index
    %c0_15 = arith.constant 0 : index
    %c0_16 = arith.constant 0 : index
    %46 = vector.load %arg2[%c4, %c0_15, %c0_16] : memref<6x56x128xf32, #tpu.memory_space<vmem>>, vector<1x56x128xf32>
    %47 = vector.shape_cast %46 : vector<1x56x128xf32> to vector<56x128xf32>
    %cst_17 = arith.constant dense<0.000000e+00> : vector<128x128xf32>
    %48 = tpu.matmul %45, %47, %cst_17 {dimension_numbers = #tpu.dot_dimension_numbers<[1], [0], [0], [1], [0, 0, 1, 1], [], []>} : vector<128x56xf32>, vector<56x128xf32>, vector<128x128xf32> -> vector<128x128xf32>
    %49 = arith.addf %40, %48 : vector<128x128xf32>
    %50 = vector.extract_strided_slice %4 {offsets = [0, 5], sizes = [128, 1], strides = [1, 1]} : vector<128x6xi32> to vector<128x1xi32>
    %51 = vector.broadcast %50 : vector<128x1xi32> to vector<128x56xi32>
    %52 = arith.cmpi eq, %5, %51 : vector<128x56xi32>
    %53 = arith.extui %52 : vector<128x56xi1> to vector<128x56xi32>
    %54 = arith.sitofp %53 : vector<128x56xi32> to vector<128x56xf32>
    %c5 = arith.constant 5 : index
    %c0_18 = arith.constant 0 : index
    %c0_19 = arith.constant 0 : index
    %55 = vector.load %arg2[%c5, %c0_18, %c0_19] : memref<6x56x128xf32, #tpu.memory_space<vmem>>, vector<1x56x128xf32>
    %56 = vector.shape_cast %55 : vector<1x56x128xf32> to vector<56x128xf32>
    %cst_20 = arith.constant dense<0.000000e+00> : vector<128x128xf32>
    %57 = tpu.matmul %54, %56, %cst_20 {dimension_numbers = #tpu.dot_dimension_numbers<[1], [0], [0], [1], [0, 0, 1, 1], [], []>} : vector<128x56xf32>, vector<56x128xf32>, vector<128x128xf32> -> vector<128x128xf32>
    %58 = arith.addf %49, %57 : vector<128x128xf32>
    %59 = vector.broadcast %1 : vector<1x128xf32> to vector<128x128xf32>
    %60 = arith.addf %58, %59 : vector<128x128xf32>
    %cst_21 = arith.constant 0.000000e+00 : f32
    %61 = vector.broadcast %cst_21 : f32 to vector<128x128xf32>
    %62 = arith.maximumf %60, %61 : vector<128x128xf32>
    %63 = arith.truncf %62 : vector<128x128xf32> to vector<128x128xbf16>
    %c0_22 = arith.constant 0 : index
    %c0_23 = arith.constant 0 : index
    %64 = vector.load %arg3[%c0_22, %c0_23] : memref<128x64xbf16, #tpu.memory_space<vmem>>, vector<128x64xbf16>
    %cst_24 = arith.constant dense<0.000000e+00> : vector<128x64xf32>
    %65 = tpu.matmul %63, %64, %cst_24 {dimension_numbers = #tpu.dot_dimension_numbers<[1], [0], [0], [1], [0, 0, 1, 1], [], []>} : vector<128x128xbf16>, vector<128x64xbf16>, vector<128x64xf32> -> vector<128x64xf32>
    %66 = vector.broadcast %2 : vector<1x64xf32> to vector<128x64xf32>
    %67 = arith.addf %65, %66 : vector<128x64xf32>
    %cst_25 = arith.constant 0.000000e+00 : f32
    %68 = vector.broadcast %cst_25 : f32 to vector<128x64xf32>
    %69 = arith.maximumf %67, %68 : vector<128x64xf32>
    %70 = arith.truncf %69 : vector<128x64xf32> to vector<128x64xbf16>
    %c0_26 = arith.constant 0 : index
    %c0_27 = arith.constant 0 : index
    %71 = vector.load %arg4[%c0_26, %c0_27] : memref<64x128xbf16, #tpu.memory_space<vmem>>, vector<64x128xbf16>
    %cst_28 = arith.constant dense<0.000000e+00> : vector<128x128xf32>
    %72 = tpu.matmul %70, %71, %cst_28 {dimension_numbers = #tpu.dot_dimension_numbers<[1], [0], [0], [1], [0, 0, 1, 1], [], []>} : vector<128x64xbf16>, vector<64x128xbf16>, vector<128x128xf32> -> vector<128x128xf32>
    %73 = vector.broadcast %3 : vector<1x128xf32> to vector<128x128xf32>
    %74 = arith.addf %72, %73 : vector<128x128xf32>
    %cst_29 = arith.constant dense<0xFF800000> : vector<128xf32>
    %75 = vector.multi_reduction <maximumf>, %74, %cst_29 [1] : vector<128x128xf32> to vector<128xf32>
    %76 = vector.shape_cast %75 : vector<128xf32> to vector<128x1xf32>
    %77 = vector.broadcast %76 : vector<128x1xf32> to vector<128x128xf32>
    %78 = arith.subf %74, %77 : vector<128x128xf32>
    %79 = math.exp %78 : vector<128x128xf32>
    %cst_30 = arith.constant dense<0.000000e+00> : vector<128xf32>
    %80 = vector.multi_reduction <add>, %79, %cst_30 [1] : vector<128x128xf32> to vector<128xf32>
    %81 = vector.shape_cast %80 : vector<128xf32> to vector<128x1xf32>
    %82 = tpu.reciprocal %81 {approx = true} : vector<128x1xf32> -> vector<128x1xf32>
    %83 = vector.broadcast %82 : vector<128x1xf32> to vector<128x128xf32>
    %84 = arith.mulf %79, %83 : vector<128x128xf32>
    %85 = arith.truncf %84 : vector<128x128xf32> to vector<128x128xbf16>
    %c0_31 = arith.constant 0 : index
    %c0_32 = arith.constant 0 : index
    %86 = vector.load %arg6[%c0_31, %c0_32] : memref<128x128xbf16, #tpu.memory_space<vmem>>, vector<128x128xbf16>
    tpu.vector_store %arg6[%c0_31, %c0_32], %85 {strides = array<i32>} : memref<128x128xbf16, #tpu.memory_space<vmem>>, vector<128x128xbf16>,
    return
  }
  func.func @transform_0(%arg0: i32) -> (i32, i32) {
    %c0_i32 = arith.constant 0 : i32
    %c0_i32_0 = arith.constant 0 : i32
    return %arg0, %c0_i32 : i32, i32
  }
  func.func @transform_1(%arg0: i32) -> (i32, i32, i32) {
    %c0_i32 = arith.constant 0 : i32
    %c0_i32_0 = arith.constant 0 : i32
    %c0_i32_1 = arith.constant 0 : i32
    %c0_i32_2 = arith.constant 0 : i32
    return %c0_i32, %c0_i32_0, %c0_i32_1 : i32, i32, i32
  }
  func.func @transform_2(%arg0: i32) -> (i32, i32) {
    %c0_i32 = arith.constant 0 : i32
    %c0_i32_0 = arith.constant 0 : i32
    %c0_i32_1 = arith.constant 0 : i32
    return %c0_i32, %c0_i32_0 : i32, i32
  }
  func.func @transform_3(%arg0: i32) -> (i32, i32) {
    %c0_i32 = arith.constant 0 : i32
    %c0_i32_0 = arith.constant 0 : i32
    %c0_i32_1 = arith.constant 0 : i32
    return %c0_i32, %c0_i32_0 : i32, i32
  }
  func.func @transform_4(%arg0: i32) -> (i32, i32) {
    %c0_i32 = arith.constant 0 : i32
    %c0_i32_0 = arith.constant 0 : i32
    %c0_i32_1 = arith.constant 0 : i32
    return %c0_i32, %c0_i32_0 : i32, i32
  }
  func.func @transform_5(%arg0: i32) -> (i32, i32) {
    %c0_i32 = arith.constant 0 : i32
    %c0_i32_0 = arith.constant 0 : i32
    return %arg0, %c0_i32 : i32, i32
  }
}

</mosaic_0001>

<llo_original>
// kernel: ncf_forward.1
$region0: #{ncf_forward.1}
  #allocation0 [shape = 'u32[]', space=smem, size = 0x4, offset = 0x4, fixed_abs, tag = 'smem constant byte address 0x4 - core index']
  #allocation1 [shape = 'u32[144,128]{1,0:T(1,128)}', space=vmem, size = 0x12000, scoped, tag = 'internal scratch']
  %s0 = inlined_call_operand.vmem [shape: s32[256,6], index: 0, kind: input, shape index: {}]
  %s1 = inlined_call_operand.vmem [shape: f32[6,56,128], index: 1, kind: input, shape index: {}]
  %s2 = inlined_call_operand.vmem [shape: bf16[128,64], index: 2, kind: input, shape index: {}]
  %s3 = inlined_call_operand.vmem [shape: bf16[64,128], index: 3, kind: input, shape index: {}]
  %s4 = inlined_call_operand.vmem [shape: f32[3,128], index: 4, kind: input, shape index: {}]
  %s5 = inlined_call_operand.vmem [shape: bf16[256,128], index: 5, kind: output, shape index: {}]
  %s6 = sld [smem:[#allocation0]]
  $region53: #{ncf_forward.1} parent=0
    _
  %s8 = ssub.s32 1, %s6
  %s9 = scalar_select 0, %s8, %s6
  loop: start=0, step=1, limit=4
  $region2: #{ncf_forward.1} parent=0 // loop_pre_header
    _
  $region3: #{ncf_forward.1} parent=0 // loop_header
    %s11 = sphi 0, %s15
    %p12 = scmp.ge.s32.totalorder %s11, 4
    %s21 = sphi 0, %s23
    %s24 = sphi 0, %s21
    %s25 = sphi 0, %s24
    %s41 = sphi 0, %s25
    %s45 = sphi 0, %s45
    %s47 = sphi 0, %s45
    %s48 = sphi 0, %s47
    %s62 = sphi 0, %s48
    %s66 = sphi 0, %s66
    %s68 = sphi 0, %s66
    %s69 = sphi 0, %s68
    %s83 = sphi 0, %s69
    %s87 = sphi 0, %s87
    %s89 = sphi 0, %s87
    %s90 = sphi 0, %s89
    %s104 = sphi 0, %s90
    %s108 = sphi 0, %s108
    %s110 = sphi 0, %s108
    %s111 = sphi 0, %s110
    %s125 = sphi 0, %s111
    %s131 = sphi 0, %s133
    %s134 = sphi 0, %s131
    %s135 = sphi 0, %s134
    %s151 = sphi 0, %s135
  $region4: #{ncf_forward.1} parent=0 // loop_header_branch
    %14 = sbr.rel (%p12) target = $region8
  $region5: #{ncf_forward.1} parent=0 // loop_body
    %s16 = ssub.s32 %s11, 1
    %s17 = ssub.s32 %s11, 2
    %s18 = sadd.s32 %s11, 1
    %s19 = ssub.s32 %s11, %s18
    %p20 = scmp.eq.s32.totalorder %s19, 0
    %s22 = sadd.s32 %s21, 1
    %s23 = scalar_select %p20, %s21, %s22
    %p26 = pneg %p20
    %p27 = scmp.eq.s32.totalorder %s11, 1
    %p28 = por %p26, %p27
    %p29 = scmp.ne.s32.totalorder %s21, %s24
    %p30 = scmp.eq.s32.totalorder %s11, 0
    %p31 = por %p29, %p30
    %p32 = scmp.ne.s32.totalorder %s21, %s24
    %p33 = scmp.eq.s32.totalorder %s16, 1
    %p34 = por %p32, %p33
    %p35 = scmp.ne.s32.totalorder %s24, %s25
    %p36 = scmp.eq.s32.totalorder %s16, 0
    %p37 = por %p35, %p36
    %p38 = scmp.ne.s32.totalorder %s24, %s25
    %p39 = scmp.eq.s32.totalorder %s17, 1
    %p40 = por %p38, %p39
    %p42 = scmp.ne.s32.totalorder %s25, %s41
    %p43 = scmp.eq.s32.totalorder %s17, 0
    %p44 = por %p42, %p43
    %s46 = sadd.s32 %s45, 1
    %p49 = scmp.eq.s32.totalorder %s11, 1
    %p50 = scmp.ne.s32.totalorder %s45, %s47
    %p51 = scmp.eq.s32.totalorder %s11, 0
    %p52 = por %p50, %p51
    %p53 = scmp.ne.s32.totalorder %s45, %s47
    %p54 = scmp.eq.s32.totalorder %s16, 1
    %p55 = por %p53, %p54
    %p56 = scmp.ne.s32.totalorder %s47, %s48
    %p57 = scmp.eq.s32.totalorder %s16, 0
    %p58 = por %p56, %p57
    %p59 = scmp.ne.s32.totalorder %s47, %s48
    %p60 = scmp.eq.s32.totalorder %s17, 1
    %p61 = por %p59, %p60
    %p63 = scmp.ne.s32.totalorder %s48, %s62
    %p64 = scmp.eq.s32.totalorder %s17, 0
    %p65 = por %p63, %p64
    %s67 = sadd.s32 %s66, 1
    %p70 = scmp.eq.s32.totalorder %s11, 1
    %p71 = scmp.ne.s32.totalorder %s66, %s68
    %p72 = scmp.eq.s32.totalorder %s11, 0
    %p73 = por %p71, %p72
    %p74 = scmp.ne.s32.totalorder %s66, %s68
    %p75 = scmp.eq.s32.totalorder %s16, 1
    %p76 = por %p74, %p75
    %p77 = scmp.ne.s32.totalorder %s68, %s69
    %p78 = scmp.eq.s32.totalorder %s16, 0
    %p79 = por %p77, %p78
    %p80 = scmp.ne.s32.totalorder %s68, %s69
    %p81 = scmp.eq.s32.totalorder %s17, 1
    %p82 = por %p80, %p81
    %p84 = scmp.ne.s32.totalorder %s69, %s83
    %p85 = scmp.eq.s32.totalorder %s17, 0
    %p86 = por %p84, %p85
    %s88 = sadd.s32 %s87, 1
    %p91 = scmp.eq.s32.totalorder %s11, 1
    %p92 = scmp.ne.s32.totalorder %s87, %s89
    %p93 = scmp.eq.s32.totalorder %s11, 0
    %p94 = por %p92, %p93
    %p95 = scmp.ne.s32.totalorder %s87, %s89
    %p96 = scmp.eq.s32.totalorder %s16, 1
    %p97 = por %p95, %p96
    %p98 = scmp.ne.s32.totalorder %s89, %s90
    %p99 = scmp.eq.s32.totalorder %s16, 0
    %p100 = por %p98, %p99
    %p101 = scmp.ne.s32.totalorder %s89, %s90
    %p102 = scmp.eq.s32.totalorder %s17, 1
    %p103 = por %p101, %p102
    %p105 = scmp.ne.s32.totalorder %s90, %s104
    %p106 = scmp.eq.s32.totalorder %s17, 0
    %p107 = por %p105, %p106
    %s109 = sadd.s32 %s108, 1
    %p112 = scmp.eq.s32.totalorder %s11, 1
    %p113 = scmp.ne.s32.totalorder %s108, %s110
    %p114 = scmp.eq.s32.totalorder %s11, 0
    %p115 = por %p113, %p114
    %p116 = scmp.ne.s32.totalorder %s108, %s110
    %p117 = scmp.eq.s32.totalorder %s16, 1
    %p118 = por %p116, %p117
    %p119 = scmp.ne.s32.totalorder %s110, %s111
    %p120 = scmp.eq.s32.totalorder %s16, 0
    %p121 = por %p119, %p120
    %p122 = scmp.ne.s32.totalorder %s110, %s111
    %p123 = scmp.eq.s32.totalorder %s17, 1
    %p124 = por %p122, %p123
    %p126 = scmp.ne.s32.totalorder %s111, %s125
    %p127 = scmp.eq.s32.totalorder %s17, 0
    %p128 = por %p126, %p127
    %s129 = ssub.s32 %s11, %s18
    %p130 = scmp.eq.s32.totalorder %s129, 0
    %s132 = sadd.s32 %s131, 1
    %s133 = scalar_select %p130, %s131, %s132
    %p136 = pneg %p130
    %p137 = scmp.eq.s32.totalorder %s11, 1
    %p138 = por %p136, %p137
    %p139 = scmp.ne.s32.totalorder %s131, %s134
    %p140 = scmp.eq.s32.totalorder %s11, 0
    %p141 = por %p139, %p140
    %p142 = scmp.ne.s32.totalorder %s131, %s134
    %p143 = scmp.eq.s32.totalorder %s16, 1
    %p144 = por %p142, %p143
    %p145 = scmp.ne.s32.totalorder %s134, %s135
    %p146 = scmp.eq.s32.totalorder %s16, 0
    %p147 = por %p145, %p146
    %p148 = scmp.ne.s32.totalorder %s134, %s135
    %p149 = scmp.eq.s32.totalorder %s17, 1
    %p150 = por %p148, %p149
    %p152 = scmp.ne.s32.totalorder %s135, %s151
    %p153 = scmp.eq.s32.totalorder %s17, 0
    %p154 = por %p152, %p153
    %p155 = scmp.le.s32.totalorder 1, %s11
    %p156 = scmp.lt.s32.totalorder %s11, 3
    %p157 = pnand %p155, %p156
    %p158 = pneg %p157
    // Predicated region
    $region9: #{ncf_forward.1} parent=5 // pred_check
      _
    $region10: #{ncf_forward.1} parent=5 // pred_check_branch
      %160 = sbr.rel (%p157) target = $region12
    $region11: #{ncf_forward.1} parent=5 // pred_region
      %s161 = ssub.s32 %s11, 1
      // Predicated region
      $region13: #{ncf_forward.1} parent=11 // pred_check
        %p162 = pneg %p58
      $region14: #{ncf_forward.1} parent=11 // pred_check_branch
        %164 = sbr.rel (%p162) target = $region16
      $region15: #{ncf_forward.1} parent=11 // pred_region
        _
      $region16: #{ncf_forward.1} parent=11 // pred_fallthru
        _
      // Predicated region
      $region17: #{ncf_forward.1} parent=11 // pred_check
        %p165 = pneg %p79
      $region18: #{ncf_forward.1} parent=11 // pred_check_branch
        %167 = sbr.rel (%p165) target = $region20
      $region19: #{ncf_forward.1} parent=11 // pred_region
        _
      $region20: #{ncf_forward.1} parent=11 // pred_fallthru
        _
      // Predicated region
      $region21: #{ncf_forward.1} parent=11 // pred_check
        %p168 = pneg %p100
      $region22: #{ncf_forward.1} parent=11 // pred_check_branch
        %170 = sbr.rel (%p168) target = $region24
      $region23: #{ncf_forward.1} parent=11 // pred_region
        _
      $region24: #{ncf_forward.1} parent=11 // pred_fallthru
        _
      // Predicated region
      $region25: #{ncf_forward.1} parent=11 // pred_check
        %p171 = pneg %p121
      $region26: #{ncf_forward.1} parent=11 // pred_check_branch
        %173 = sbr.rel (%p171) target = $region28
      $region27: #{ncf_forward.1} parent=11 // pred_region
        _
      $region28: #{ncf_forward.1} parent=11 // pred_fallthru
        _
    $region12: #{ncf_forward.1} parent=5 // pred_fallthru
      _
    %p174 = scmp.lt.s32.totalorder %s11, 2
    // Predicated region
    $region29: #{ncf_forward.1} parent=5 // pred_check
      %p175 = pneg %p174
    $region30: #{ncf_forward.1} parent=5 // pred_check_branch
      %177 = sbr.rel (%p175) target = $region32
    $region31: #{ncf_forward.1} parent=5 // pred_region
      // Predicated region
      $region33: #{ncf_forward.1} parent=31 // pred_check
        %p178 = pneg %p31
      $region34: #{ncf_forward.1} parent=31 // pred_check_branch
        %180 = sbr.rel (%p178) target = $region36
      $region35: #{ncf_forward.1} parent=31 // pred_region
        %s181 = smul.u32 16, %s11
        %p182 = scmp.lt.s32.totalorder %s181, 31
        %s183 = scalar_select %p182, %s181, 31
        %s184 = smul.addr %s183, 8
        %s185 = scalar_lea.vmem %s0, %s184
        %s186 = smul.u32 16, %s11
      $region36: #{ncf_forward.1} parent=31 // pred_fallthru
        _
    $region32: #{ncf_forward.1} parent=5 // pred_fallthru
      _
    %p187 = scmp.le.s32.totalorder 1, %s11
    %p188 = scmp.lt.s32.totalorder %s11, 3
    %p189 = pnand %p187, %p188
    %p190 = pneg %p189
    // Predicated region
    $region37: #{ncf_forward.1} parent=5 // pred_check
      _
    $region38: #{ncf_forward.1} parent=5 // pred_check_branch
      %192 = sbr.rel (%p189) target = $region40
    $region39: #{ncf_forward.1} parent=5 // pred_region
      %s193 = ssub.s32 %s11, 1
      %s194 = smul.u32 16, %s16
      %p195 = scmp.lt.s32.totalorder %s194, 31
      %s196 = scalar_select %p195, %s194, 31
      %s197 = smul.addr %s196, 8
      %s198 = scalar_lea.vmem %s0, %s197
      %p199 = pneg %p37
      %p200 = pneg %p34
      %p201 = pneg %p58
      %p202 = pneg %p55
      %p203 = pneg %p79
      %p204 = pneg %p76
      %p205 = pneg %p100
      %p206 = pneg %p97
      %p207 = pneg %p121
      %p208 = pneg %p118
      %p209 = pneg %p147
      %p210 = pneg %p144
      %s211 = smul.u32 16, %s16
      %p212 = scmp.lt.s32.totalorder %s211, 31
      %s213 = scalar_select %p212, %s211, 31
      %s214 = smul.addr %s213, 4
      %s215 = scalar_lea.vmem %s5, %s214
      %s216 = smul.u32 16, %s16
      %p217 = scmp.lt.s32.totalorder %s216, 31
      %s218 = scalar_select %p217, %s216, 31
      %s219 = smul.addr %s218, 8
      %s220 = scalar_lea.vmem %s0, %s219
      %s221 = smul.u32 16, %s16
      %s222 = smul.u32 16, %s16
      %p223 = scmp.lt.s32.totalorder %s222, 31
      %s224 = scalar_select %p223, %s222, 31
      %s225 = smul.addr %s224, 4
      %s226 = scalar_lea.vmem %s5, %s225
      %s227 = smul.u32 16, %s16
      %v229 = vld [vmem:[%s4] sm:$0x7]
      %v230 = vld [vmem:[%s220] sm:$0xff]
      %v231 = vld [vmem:[%s220 + $0x8] sm:$0xff]
      %v232 = vld [vmem:[%s220 + $0x10] sm:$0xff]
      %v233 = vld [vmem:[%s220 + $0x18] sm:$0xff]
      %v234 = vld [vmem:[%s220 + $0x20] sm:$0xff]
      %v235 = vld [vmem:[%s220 + $0x28] sm:$0xff]
      %v236 = vld [vmem:[%s220 + $0x30] sm:$0xff]
      %v237 = vld [vmem:[%s220 + $0x38] sm:$0xff]
      %v238 = vld [vmem:[%s220 + $0x40] sm:$0xff]
      %v239 = vld [vmem:[%s220 + $0x48] sm:$0xff]
      %v240 = vld [vmem:[%s220 + $0x50] sm:$0xff]
      %v241 = vld [vmem:[%s220 + $0x58] sm:$0xff]
      %v242 = vld [vmem:[%s220 + $0x60] sm:$0xff]
      %v243 = vld [vmem:[%s220 + $0x68] sm:$0xff]
      %v244 = vld [vmem:[%s220 + $0x70] sm:$0xff]
      %v245 = vld [vmem:[%s220 + $0x78] sm:$0xff]
      %v246 = vlaneseq
      %v247 = vand.u32 %v246, 127
      %248 = vset.pattern.permute.xlu0 0
      %249 = vperm.xlu0 %248, %v230
      %v250 = vpop.permute.xlu0 %249
      %251 = vset.pattern.permute.xlu0 0
      %252 = vperm.xlu0 %251, %v231
      %v253 = vpop.permute.xlu0 %252
      %254 = vset.pattern.permute.xlu0 0
      %255 = vperm.xlu0 %254, %v232
      %v256 = vpop.permute.xlu0 %255
      %257 = vset.pattern.permute.xlu0 0
      %258 = vperm.xlu0 %257, %v233
      %v259 = vpop.permute.xlu0 %258
      %260 = vset.pattern.permute.xlu0 0
      %261 = vperm.xlu0 %260, %v234
      %v262 = vpop.permute.xlu0 %261
      %263 = vset.pattern.permute.xlu0 0
      %264 = vperm.xlu0 %263, %v235
      %v265 = vpop.permute.xlu0 %264
      %266 = vset.pattern.permute.xlu0 0
      %267 = vperm.xlu0 %266, %v236
      %v268 = vpop.permute.xlu0 %267
      %269 = vset.pattern.permute.xlu0 0
      %270 = vperm.xlu0 %269, %v237
      %v271 = vpop.permute.xlu0 %270
      %272 = vset.pattern.permute.xlu0 0
      %273 = vperm.xlu0 %272, %v238
      %v274 = vpop.permute.xlu0 %273
      %275 = vset.pattern.permute.xlu0 0
      %276 = vperm.xlu0 %275, %v239
      %v277 = vpop.permute.xlu0 %276
      %278 = vset.pattern.permute.xlu0 0
      %279 = vperm.xlu0 %278, %v240
      %v280 = vpop.permute.xlu0 %279
      %281 = vset.pattern.permute.xlu0 0
      %282 = vperm.xlu0 %281, %v241
      %v283 = vpop.permute.xlu0 %282
      %284 = vset.pattern.permute.xlu0 0
      %285 = vperm.xlu0 %284, %v242
      %v286 = vpop.permute.xlu0 %285
      %287 = vset.pattern.permute.xlu0 0
      %288 = vperm.xlu0 %287, %v243
      %v289 = vpop.permute.xlu0 %288
      %290 = vset.pattern.permute.xlu0 0
      %291 = vperm.xlu0 %290, %v244
      %v292 = vpop.permute.xlu0 %291
      %293 = vset.pattern.permute.xlu0 0
      %294 = vperm.xlu0 %293, %v245
      %v295 = vpop.permute.xlu0 %294
      %vm296 = vcmp.eq.s32.totalorder %v247, %v250
      %vm297 = vcmp.eq.s32.totalorder %v247, %v253
      %vm298 = vcmp.eq.s32.totalorder %v247, %v256
      %vm299 = vcmp.eq.s32.totalorder %v247, %v259
      %vm300 = vcmp.eq.s32.totalorder %v247, %v262
      %vm301 = vcmp.eq.s32.totalorder %v247, %v265
      %vm302 = vcmp.eq.s32.totalorder %v247, %v268
      %vm303 = vcmp.eq.s32.totalorder %v247, %v271
      %vm304 = vcmp.eq.s32.totalorder %v247, %v274
      %vm305 = vcmp.eq.s32.totalorder %v247, %v277
      %vm306 = vcmp.eq.s32.totalorder %v247, %v280
      %vm307 = vcmp.eq.s32.totalorder %v247, %v283
      %vm308 = vcmp.eq.s32.totalorder %v247, %v286
      %vm309 = vcmp.eq.s32.totalorder %v247, %v289
      %vm310 = vcmp.eq.s32.totalorder %v247, %v292
      %vm311 = vcmp.eq.s32.totalorder %v247, %v295
      %v312 = vsel %vm296, 1, 0
      %v313 = vsel %vm297, 1, 0
      %v314 = vsel %vm298, 1, 0
      %v315 = vsel %vm299, 1, 0
      %v316 = vsel %vm300, 1, 0
      %v317 = vsel %vm301, 1, 0
      %v318 = vsel %vm302, 1, 0
      %v319 = vsel %vm303, 1, 0
      %v320 = vsel %vm304, 1, 0
      %v321 = vsel %vm305, 1, 0
      %v322 = vsel %vm306, 1, 0
      %v323 = vsel %vm307, 1, 0
      %v324 = vsel %vm308, 1, 0
      %v325 = vsel %vm309, 1, 0
      %v326 = vsel %vm310, 1, 0
      %v327 = vsel %vm311, 1, 0
      %v328 = vcvt.s32.f32 %v312
      %v329 = vcvt.s32.f32 %v313
      %v330 = vcvt.s32.f32 %v314
      %v331 = vcvt.s32.f32 %v315
      %v332 = vcvt.s32.f32 %v316
      %v333 = vcvt.s32.f32 %v317
      %v334 = vcvt.s32.f32 %v318
      %v335 = vcvt.s32.f32 %v319
      %v336 = vcvt.s32.f32 %v320
      %v337 = vcvt.s32.f32 %v321
      %v338 = vcvt.s32.f32 %v322
      %v339 = vcvt.s32.f32 %v323
      %v340 = vcvt.s32.f32 %v324
      %v341 = vcvt.s32.f32 %v325
      %v342 = vcvt.s32.f32 %v326
      %v343 = vcvt.s32.f32 %v327
      %v344 = vld [vmem:[%s1] sm:$0xff]
      %v345 = vld [vmem:[%s1 + $0x8] sm:$0xff]
      %v346 = vld [vmem:[%s1 + $0x10] sm:$0xff]
      %v347 = vld [vmem:[%s1 + $0x18] sm:$0xff]
      %v348 = vld [vmem:[%s1 + $0x20] sm:$0xff]
      %v349 = vld [vmem:[%s1 + $0x28] sm:$0xff]
      %v350 = vld [vmem:[%s1 + $0x30] sm:$0xff]
      %351 = vset.pattern.permute.xlu0 1
      %352 = vperm.xlu0 %351, %v230
      %v353 = vpop.permute.xlu0 %352
      %354 = vset.pattern.permute.xlu0 1
      %355 = vperm.xlu0 %354, %v231
      %v356 = vpop.permute.xlu0 %355
      %357 = vset.pattern.permute.xlu0 1
      %358 = vperm.xlu0 %357, %v232
      %v359 = vpop.permute.xlu0 %358
      %360 = vset.pattern.permute.xlu0 1
      %361 = vperm.xlu0 %360, %v233
      %v362 = vpop.permute.xlu0 %361
      %363 = vset.pattern.permute.xlu0 1
      %364 = vperm.xlu0 %363, %v234
      %v365 = vpop.permute.xlu0 %364
      %366 = vset.pattern.permute.xlu0 1
      %367 = vperm.xlu0 %366, %v235
      %v368 = vpop.permute.xlu0 %367
      %369 = vset.pattern.permute.xlu0 1
      %370 = vperm.xlu0 %369, %v236
      %v371 = vpop.permute.xlu0 %370
      %372 = vset.pattern.permute.xlu0 1
      %373 = vperm.xlu0 %372, %v237
      %v374 = vpop.permute.xlu0 %373
      %375 = vset.pattern.permute.xlu0 1
      %376 = vperm.xlu0 %375, %v238
      %v377 = vpop.permute.xlu0 %376
      %378 = vset.pattern.permute.xlu0 1
      %379 = vperm.xlu0 %378, %v239
      %v380 = vpop.permute.xlu0 %379
      %381 = vset.pattern.permute.xlu0 1
      %382 = vperm.xlu0 %381, %v240
      %v383 = vpop.permute.xlu0 %382
      %384 = vset.pattern.permute.xlu0 1
      %385 = vperm.xlu0 %384, %v241
      %v386 = vpop.permute.xlu0 %385
      %387 = vset.pattern.permute.xlu0 1
      %388 = vperm.xlu0 %387, %v242
      %v389 = vpop.permute.xlu0 %388
      %390 = vset.pattern.permute.xlu0 1
      %391 = vperm.xlu0 %390, %v243
      %v392 = vpop.permute.xlu0 %391
      %393 = vset.pattern.permute.xlu0 1
      %394 = vperm.xlu0 %393, %v244
      %v395 = vpop.permute.xlu0 %394
      %396 = vset.pattern.permute.xlu0 1
      %397 = vperm.xlu0 %396, %v245
      %v398 = vpop.permute.xlu0 %397
      %vm399 = vcmp.eq.s32.totalorder %v247, %v353
      %vm400 = vcmp.eq.s32.totalorder %v247, %v356
      %vm401 = vcmp.eq.s32.totalorder %v247, %v359
      %vm402 = vcmp.eq.s32.totalorder %v247, %v362
      %vm403 = vcmp.eq.s32.totalorder %v247, %v365
      %vm404 = vcmp.eq.s32.totalorder %v247, %v368
      %vm405 = vcmp.eq.s32.totalorder %v247, %v371
      %vm406 = vcmp.eq.s32.totalorder %v247, %v374
      %vm407 = vcmp.eq.s32.totalorder %v247, %v377
      %vm408 = vcmp.eq.s32.totalorder %v247, %v380
      %vm409 = vcmp.eq.s32.totalorder %v247, %v383
      %vm410 = vcmp.eq.s32.totalorder %v247, %v386
      %vm411 = vcmp.eq.s32.totalorder %v247, %v389
      %vm412 = vcmp.eq.s32.totalorder %v247, %v392
      %vm413 = vcmp.eq.s32.totalorder %v247, %v395
      %vm414 = vcmp.eq.s32.totalorder %v247, %v398
      %v415 = vsel %vm399, 1, 0
      %v416 = vsel %vm400, 1, 0
      %v417 = vsel %vm401, 1, 0
      %v418 = vsel %vm402, 1, 0
      %v419 = vsel %vm403, 1, 0
      %v420 = vsel %vm404, 1, 0
      %v421 = vsel %vm405, 1, 0
      %v422 = vsel %vm406, 1, 0
      %v423 = vsel %vm407, 1, 0
      %v424 = vsel %vm408, 1, 0
      %v425 = vsel %vm409, 1, 0
      %v426 = vsel %vm410, 1, 0
      %v427 = vsel %vm411, 1, 0
      %v428 = vsel %vm412, 1, 0
      %v429 = vsel %vm413, 1, 0
      %v430 = vsel %vm414, 1, 0
      %v431 = vcvt.s32.f32 %v415
      %v432 = vcvt.s32.f32 %v416
      %v433 = vcvt.s32.f32 %v417
      %v434 = vcvt.s32.f32 %v418
      %v435 = vcvt.s32.f32 %v419
      %v436 = vcvt.s32.f32 %v420
      %v437 = vcvt.s32.f32 %v421
      %v438 = vcvt.s32.f32 %v422
      %v439 = vcvt.s32.f32 %v423
      %v440 = vcvt.s32.f32 %v424
      %v441 = vcvt.s32.f32 %v425
      %v442 = vcvt.s32.f32 %v426
      %v443 = vcvt.s32.f32 %v427
      %v444 = vcvt.s32.f32 %v428
      %v445 = vcvt.s32.f32 %v429
      %v446 = vcvt.s32.f32 %v430
      %s447 = scalar_lea.vmem %s1, 56
      %v448 = vld [vmem:[%s447] sm:$0xff]
      %v449 = vld [vmem:[%s447 + $0x8] sm:$0xff]
      %v450 = vld [vmem:[%s447 + $0x10] sm:$0xff]
      %v451 = vld [vmem:[%s447 + $0x18] sm:$0xff]
      %v452 = vld [vmem:[%s447 + $0x20] sm:$0xff]
      %v453 = vld [vmem:[%s447 + $0x28] sm:$0xff]
      %v454 = vld [vmem:[%s447 + $0x30] sm:$0xff]
      %vm455 = vcmask 457728
      %v457 = vsel %vm455, %v431, 0
      %v460 = vsel %vm455, %v432, 0
      %v463 = vsel %vm455, %v433, 0
      %v466 = vsel %vm455, %v434, 0
      %v469 = vsel %vm455, %v435, 0
      %v472 = vsel %vm455, %v436, 0
      %v475 = vsel %vm455, %v437, 0
      %v478 = vsel %vm455, %v438, 0
      %v481 = vsel %vm455, %v439, 0
      %v484 = vsel %vm455, %v440, 0
      %v487 = vsel %vm455, %v441, 0
      %v490 = vsel %vm455, %v442, 0
      %v493 = vsel %vm455, %v443, 0
      %v496 = vsel %vm455, %v444, 0
      %v499 = vsel %vm455, %v445, 0
      %v502 = vsel %vm455, %v446, 0
      %504 = vmatprep.subr.mxu0 0.0
      %505 = vmatpush1.msra.mxu0 %v448
      %506 = vmatprep.subr.mxu0 0.0
      %507 = vmatpush1.msra.mxu0 %v449
      %508 = vmatprep.subr.mxu0 0.0
      %509 = vmatpush1.msra.mxu0 %v450
      %510 = vmatprep.subr.mxu0 0.0
      %511 = vmatpush1.msra.mxu0 %v451
      %512 = vmatprep.subr.mxu0 0.0
      %513 = vmatpush1.msra.mxu0 %v452
      %514 = vmatprep.subr.mxu0 0.0
      %515 = vmatpush1.msra.mxu0 %v453
      %516 = vmatprep.subr.mxu0 0.0
      %517 = vmatpush1.msra.mxu0 %v454
      %518 = vmatprep.subr.mxu0 0.0
      %519 = vmatpush1.msra.mxu0 0.0
      %520 = vmatprep.subr.mxu0 0.0
      %521 = vmatpush1.msra.mxu0 0.0
      %522 = vmatprep.subr.mxu0 0.0
      %523 = vmatpush1.msra.mxu0 0.0
      %524 = vmatprep.subr.mxu0 0.0
      %525 = vmatpush1.msra.mxu0 0.0
      %526 = vmatprep.subr.mxu0 0.0
      %527 = vmatpush1.msra.mxu0 0.0
      %528 = vmatprep.subr.mxu0 0.0
      %529 = vmatpush1.msra.mxu0 0.0
      %530 = vmatprep.subr.mxu0 0.0
      %531 = vmatpush1.msra.mxu0 0.0
      %532 = vmatprep.subr.mxu0 0.0
      %533 = vmatpush1.msra.mxu0 0.0
      %534 = vmatprep.subr.mxu0 0.0
      %535 = vmatpush1.msra.mxu0 0.0
      %536 = vmatprep.subr.mxu0 0.0
      %537 = vmatpush1.msra.mxu0 0.0
      %538 = vmatprep.subr.mxu0 0.0
      %539 = vmatpush1.msra.mxu0 0.0
      %540 = vmatprep.subr.mxu0 0.0
      %541 = vmatpush1.msra.mxu0 0.0
      %542 = vmatprep.subr.mxu0 0.0
      %543 = vmatpush1.msra.mxu0 0.0
      %544 = vmatprep.subr.mxu0 0.0
      %545 = vmatpush1.msra.mxu0 0.0
      %546 = vmatprep.subr.mxu0 0.0
      %547 = vmatpush1.msra.mxu0 0.0
      %548 = vmatprep.subr.mxu0 0.0
      %549 = vmatpush1.msra.mxu0 0.0
      %550 = vmatprep.subr.mxu0 0.0
      %551 = vmatpush1.msra.mxu0 0.0
      %552 = vmatprep.subr.mxu0 0.0
      %553 = vmatpush1.msra.mxu0 0.0
      %554 = vmatprep.subr.mxu0 0.0
      %555 = vmatpush1.msra.mxu0 0.0
      %556 = vmatprep.subr.mxu0 0.0
      %557 = vmatpush1.msra.mxu0 0.0
      %558 = vmatprep.subr.mxu0 0.0
      %559 = vmatpush1.msra.mxu0 0.0
      %560 = vmatprep.subr.mxu0 0.0
      %561 = vmatpush1.msra.mxu0 0.0
      %562 = vmatprep.subr.mxu0 0.0
      %563 = vmatpush1.msra.mxu0 0.0
      %564 = vmatprep.subr.mxu0 0.0
      %565 = vmatpush1.msra.mxu0 0.0
      %566 = vmatprep.subr.mxu0 0.0
      %567 = vmatpush1.msra.mxu0 0.0
      %568 = vmatprep.mubr.f32.mxu0 0.0
      %569 = vmatmul.mubr.f32.gmra.mrb[0].mxu0 %v457
      %v570 = vpop.f32.mrb[0].mxu0
      %v571 = vadd.f32 0.0, %v570
      %v572 = vpop.f32.mrb[0].mxu0
      %573 = vmatprep.mubr.f32.mxu0 0.0
      %574 = vmatmul.mubr.f32.gmra.mrb[0].mxu0 %v460
      %v575 = vpop.f32.mrb[0].mxu0
      %v576 = vadd.f32 0.0, %v575
      %v577 = vpop.f32.mrb[0].mxu0
      %578 = vmatprep.mubr.f32.mxu0 0.0
      %579 = vmatmul.mubr.f32.gmra.mrb[0].mxu0 %v463
      %v580 = vpop.f32.mrb[0].mxu0
      %v581 = vadd.f32 0.0, %v580
      %v582 = vpop.f32.mrb[0].mxu0
      %583 = vmatprep.mubr.f32.mxu0 0.0
      %584 = vmatmul.mubr.f32.gmra.mrb[0].mxu0 %v466
      %v585 = vpop.f32.mrb[0].mxu0
      %v586 = vadd.f32 0.0, %v585
      %v587 = vpop.f32.mrb[0].mxu0
      %588 = vmatprep.mubr.f32.mxu0 0.0
      %589 = vmatmul.mubr.f32.gmra.mrb[0].mxu0 %v469
      %v590 = vpop.f32.mrb[0].mxu0
      %v591 = vadd.f32 0.0, %v590
      %v592 = vpop.f32.mrb[0].mxu0
      %593 = vmatprep.mubr.f32.mxu0 0.0
      %594 = vmatmul.mubr.f32.gmra.mrb[0].mxu0 %v472
      %v595 = vpop.f32.mrb[0].mxu0
      %v596 = vadd.f32 0.0, %v595
      %v597 = vpop.f32.mrb[0].mxu0
      %598 = vmatprep.mubr.f32.mxu0 0.0
      %599 = vmatmul.mubr.f32.gmra.mrb[0].mxu0 %v475
      %v600 = vpop.f32.mrb[0].mxu0
      %v601 = vadd.f32 0.0, %v600
      %v602 = vpop.f32.mrb[0].mxu0
      %603 = vmatprep.mubr.f32.mxu0 0.0
      %604 = vmatmul.mubr.f32.gmra.mrb[0].mxu0 %v478
      %v605 = vpop.f32.mrb[0].mxu0
      %v606 = vadd.f32 0.0, %v605
      %v607 = vpop.f32.mrb[0].mxu0
      %608 = vmatprep.mubr.f32.mxu0 0.0
      %609 = vmatmul.mubr.f32.gmra.mrb[0].mxu0 %v481
      %v610 = vpop.f32.mrb[0].mxu0
      %v611 = vadd.f32 0.0, %v610
      %v612 = vpop.f32.mrb[0].mxu0
      %613 = vmatprep.mubr.f32.mxu0 0.0
      %614 = vmatmul.mubr.f32.gmra.mrb[0].mxu0 %v484
      %v615 = vpop.f32.mrb[0].mxu0
      %v616 = vadd.f32 0.0, %v615
      %v617 = vpop.f32.mrb[0].mxu0
      %618 = vmatprep.mubr.f32.mxu0 0.0
      %619 = vmatmul.mubr.f32.gmra.mrb[0].mxu0 %v487
      %v620 = vpop.f32.mrb[0].mxu0
      %v621 = vadd.f32 0.0, %v620
      %v622 = vpop.f32.mrb[0].mxu0
      %623 = vmatprep.mubr.f32.mxu0 0.0
      %624 = vmatmul.mubr.f32.gmra.mrb[0].mxu0 %v490
      %v625 = vpop.f32.mrb[0].mxu0
      %v626 = vadd.f32 0.0, %v625
      %v627 = vpop.f32.mrb[0].mxu0
      %628 = vmatprep.mubr.f32.mxu0 0.0
      %629 = vmatmul.mubr.f32.gmra.mrb[0].mxu0 %v493
      %v630 = vpop.f32.mrb[0].mxu0
      %v631 = vadd.f32 0.0, %v630
      %v632 = vpop.f32.mrb[0].mxu0
      %633 = vmatprep.mubr.f32.mxu0 0.0
      %634 = vmatmul.mubr.f32.gmra.mrb[0].mxu0 %v496
      %v635 = vpop.f32.mrb[0].mxu0
      %v636 = vadd.f32 0.0, %v635
      %v637 = vpop.f32.mrb[0].mxu0
      %638 = vmatprep.mubr.f32.mxu0 0.0
      %639 = vmatmul.mubr.f32.gmra.mrb[0].mxu0 %v499
      %v640 = vpop.f32.mrb[0].mxu0
      %v641 = vadd.f32 0.0, %v640
      %v642 = vpop.f32.mrb[0].mxu0
      %643 = vmatprep.mubr.f32.mxu0 0.0
      %644 = vmatmul.mubr.f32.gmra.mrb[0].mxu0 %v502
      %v645 = vpop.f32.mrb[0].mxu0
      %v646 = vadd.f32 0.0, %v645
      %v647 = vpop.f32.mrb[0].mxu0
      %648 = vdwg.mxu0
      %v650 = vsel %vm455, %v328, 0
      %v653 = vsel %vm455, %v329, 0
      %v656 = vsel %vm455, %v330, 0
      %v659 = vsel %vm455, %v331, 0
      %v662 = vsel %vm455, %v332, 0
      %v665 = vsel %vm455, %v333, 0
      %v668 = vsel %vm455, %v334, 0
      %v671 = vsel %vm455, %v335, 0
      %v674 = vsel %vm455, %v336, 0
      %v677 = vsel %vm455, %v337, 0
      %v680 = vsel %vm455, %v338, 0
      %v683 = vsel %vm455, %v339, 0
      %v686 = vsel %vm455, %v340, 0
      %v689 = vsel %vm455, %v341, 0
      %v692 = vsel %vm455, %v342, 0
      %v695 = vsel %vm455, %v343, 0
      %697 = vmatprep.subr.mxu0 0.0
      %698 = vmatpush1.msra.mxu0 %v344
      %699 = vmatprep.subr.mxu0 0.0
      %700 = vmatpush1.msra.mxu0 %v345
      %701 = vmatprep.subr.mxu0 0.0
      %702 = vmatpush1.msra.mxu0 %v346
      %703 = vmatprep.subr.mxu0 0.0
      %704 = vmatpush1.msra.mxu0 %v347
      %705 = vmatprep.subr.mxu0 0.0
      %706 = vmatpush1.msra.mxu0 %v348
      %707 = vmatprep.subr.mxu0 0.0
      %708 = vmatpush1.msra.mxu0 %v349
      %709 = vmatprep.subr.mxu0 0.0
      %710 = vmatpush1.msra.mxu0 %v350
      %711 = vmatprep.subr.mxu0 0.0
      %712 = vmatpush1.msra.mxu0 0.0
      %713 = vmatprep.subr.mxu0 0.0
      %714 = vmatpush1.msra.mxu0 0.0
      %715 = vmatprep.subr.mxu0 0.0
      %716 = vmatpush1.msra.mxu0 0.0
      %717 = vmatprep.subr.mxu0 0.0
      %718 = vmatpush1.msra.mxu0 0.0
      %719 = vmatprep.subr.mxu0 0.0
      %720 = vmatpush1.msra.mxu0 0.0
      %721 = vmatprep.subr.mxu0 0.0
      %722 = vmatpush1.msra.mxu0 0.0
      %723 = vmatprep.subr.mxu0 0.0
      %724 = vmatpush1.msra.mxu0 0.0
      %725 = vmatprep.subr.mxu0 0.0
      %726 = vmatpush1.msra.mxu0 0.0
      %727 = vmatprep.subr.mxu0 0.0
      %728 = vmatpush1.msra.mxu0 0.0
      %729 = vmatprep.subr.mxu0 0.0
      %730 = vmatpush1.msra.mxu0 0.0
      %731 = vmatprep.subr.mxu0 0.0
      %732 = vmatpush1.msra.mxu0 0.0
      %733 = vmatprep.subr.mxu0 0.0
      %734 = vmatpush1.msra.mxu0 0.0
      %735 = vmatprep.subr.mxu0 0.0
      %736 = vmatpush1.msra.mxu0 0.0
      %737 = vmatprep.subr.mxu0 0.0
      %738 = vmatpush1.msra.mxu0 0.0
      %739 = vmatprep.subr.mxu0 0.0
      %740 = vmatpush1.msra.mxu0 0.0
      %741 = vmatprep.subr.mxu0 0.0
      %742 = vmatpush1.msra.mxu0 0.0
      %743 = vmatprep.subr.mxu0 0.0
      %744 = vmatpush1.msra.mxu0 0.0
      %745 = vmatprep.subr.mxu0 0.0
      %746 = vmatpush1.msra.mxu0 0.0
      %747 = vmatprep.subr.mxu0 0.0
      %748 = vmatpush1.msra.mxu0 0.0
      %749 = vmatprep.subr.mxu0 0.0
      %750 = vmatpush1.msra.mxu0 0.0
      %751 = vmatprep.subr.mxu0 0.0
      %752 = vmatpush1.msra.mxu0 0.0
      %753 = vmatprep.subr.mxu0 0.0
      %754 = vmatpush1.msra.mxu0 0.0
      %755 = vmatprep.subr.mxu0 0.0
      %756 = vmatpush1.msra.mxu0 0.0
      %757 = vmatprep.subr.mxu0 0.0
      %758 = vmatpush1.msra.mxu0 0.0
      %759 = vmatprep.subr.mxu0 0.0
      %760 = vmatpush1.msra.mxu0 0.0
      %761 = vmatprep.mubr.f32.mxu0 0.0
      %762 = vmatmul.mubr.f32.gmra.mrb[0].mxu0 %v650
      %v763 = vpop.f32.mrb[0].mxu0
      %v764 = vadd.f32 %v571, %v763
      %v765 = vpop.f32.mrb[0].mxu0
      %766 = vmatprep.mubr.f32.mxu0 0.0
      %767 = vmatmul.mubr.f32.gmra.mrb[0].mxu0 %v653
      %v768 = vpop.f32.mrb[0].mxu0
      %v769 = vadd.f32 %v576, %v768
      %v770 = vpop.f32.mrb[0].mxu0
      %771 = vmatprep.mubr.f32.mxu0 0.0
      %772 = vmatmul.mubr.f32.gmra.mrb[0].mxu0 %v656
      %v773 = vpop.f32.mrb[0].mxu0
      %v774 = vadd.f32 %v581, %v773
      %v775 = vpop.f32.mrb[0].mxu0
      %776 = vmatprep.mubr.f32.mxu0 0.0
      %777 = vmatmul.mubr.f32.gmra.mrb[0].mxu0 %v659
      %v778 = vpop.f32.mrb[0].mxu0
      %v779 = vadd.f32 %v586, %v778
      %v780 = vpop.f32.mrb[0].mxu0
      %781 = vmatprep.mubr.f32.mxu0 0.0
      %782 = vmatmul.mubr.f32.gmra.mrb[0].mxu0 %v662
      %v783 = vpop.f32.mrb[0].mxu0
      %v784 = vadd.f32 %v591, %v783
      %v785 = vpop.f32.mrb[0].mxu0
      %786 = vmatprep.mubr.f32.mxu0 0.0
      %787 = vmatmul.mubr.f32.gmra.mrb[0].mxu0 %v665
      %v788 = vpop.f32.mrb[0].mxu0
      %v789 = vadd.f32 %v596, %v788
      %v790 = vpop.f32.mrb[0].mxu0
      %791 = vmatprep.mubr.f32.mxu0 0.0
      %792 = vmatmul.mubr.f32.gmra.mrb[0].mxu0 %v668
      %v793 = vpop.f32.mrb[0].mxu0
      %v794 = vadd.f32 %v601, %v793
      %v795 = vpop.f32.mrb[0].mxu0
      %796 = vmatprep.mubr.f32.mxu0 0.0
      %797 = vmatmul.mubr.f32.gmra.mrb[0].mxu0 %v671
      %v798 = vpop.f32.mrb[0].mxu0
      %v799 = vadd.f32 %v606, %v798
      %v800 = vpop.f32.mrb[0].mxu0
      %801 = vmatprep.mubr.f32.mxu0 0.0
      %802 = vmatmul.mubr.f32.gmra.mrb[0].mxu0 %v674
      %v803 = vpop.f32.mrb[0].mxu0
      %v804 = vadd.f32 %v611, %v803
      %v805 = vpop.f32.mrb[0].mxu0
      %806 = vmatprep.mubr.f32.mxu0 0.0
      %807 = vmatmul.mubr.f32.gmra.mrb[0].mxu0 %v677
      %v808 = vpop.f32.mrb[0].mxu0
      %v809 = vadd.f32 %v616, %v808
      %v810 = vpop.f32.mrb[0].mxu0
      %811 = vmatprep.mubr.f32.mxu0 0.0
      %812 = vmatmul.mubr.f32.gmra.mrb[0].mxu0 %v680
      %v813 = vpop.f32.mrb[0].mxu0
      %v814 = vadd.f32 %v621, %v813
      %v815 = vpop.f32.mrb[0].mxu0
      %816 = vmatprep.mubr.f32.mxu0 0.0
      %817 = vmatmul.mubr.f32.gmra.mrb[0].mxu0 %v683
      %v818 = vpop.f32.mrb[0].mxu0
      %v819 = vadd.f32 %v626, %v818
      %v820 = vpop.f32.mrb[0].mxu0
      %821 = vmatprep.mubr.f32.mxu0 0.0
      %822 = vmatmul.mubr.f32.gmra.mrb[0].mxu0 %v686
      %v823 = vpop.f32.mrb[0].mxu0
      %v824 = vadd.f32 %v631, %v823
      %v825 = vpop.f32.mrb[0].mxu0
      %826 = vmatprep.mubr.f32.mxu0 0.0
      %827 = vmatmul.mubr.f32.gmra.mrb[0].mxu0 %v689
      %v828 = vpop.f32.mrb[0].mxu0
      %v829 = vadd.f32 %v636, %v828
      %v830 = vpop.f32.mrb[0].mxu0
      %831 = vmatprep.mubr.f32.mxu0 0.0
      %832 = vmatmul.mubr.f32.gmra.mrb[0].mxu0 %v692
      %v833 = vpop.f32.mrb[0].mxu0
      %v834 = vadd.f32 %v641, %v833
      %v835 = vpop.f32.mrb[0].mxu0
      %836 = vmatprep.mubr.f32.mxu0 0.0
      %837 = vmatmul.mubr.f32.gmra.mrb[0].mxu0 %v695
      %v838 = vpop.f32.mrb[0].mxu0
      %v839 = vadd.f32 %v646, %v838
      %v840 = vpop.f32.mrb[0].mxu0
      %841 = vdwg.mxu0
      %842 = vset.pattern.permute.xlu0 2
      %843 = vperm.xlu0 %842, %v230
      %v844 = vpop.permute.xlu0 %843
      %845 = vset.pattern.permute.xlu0 2
      %846 = vperm.xlu0 %845, %v231
      %v847 = vpop.permute.xlu0 %846
      %848 = vset.pattern.permute.xlu0 2
      %849 = vperm.xlu0 %848, %v232
      %v850 = vpop.permute.xlu0 %849
      %851 = vset.pattern.permute.xlu0 2
      %852 = vperm.xlu0 %851, %v233
      %v853 = vpop.permute.xlu0 %852
      %854 = vset.pattern.permute.xlu0 2
      %855 = vperm.xlu0 %854, %v234
      %v856 = vpop.permute.xlu0 %855
      %857 = vset.pattern.permute.xlu0 2
      %858 = vperm.xlu0 %857, %v235
      %v859 = vpop.permute.xlu0 %858
      %860 = vset.pattern.permute.xlu0 2
      %861 = vperm.xlu0 %860, %v236
      %v862 = vpop.permute.xlu0 %861
      %863 = vset.pattern.permute.xlu0 2
      %864 = vperm.xlu0 %863, %v237
      %v865 = vpop.permute.xlu0 %864
      %866 = vset.pattern.permute.xlu0 2
      %867 = vperm.xlu0 %866, %v238
      %v868 = vpop.permute.xlu0 %867
      %869 = vset.pattern.permute.xlu0 2
      %870 = vperm.xlu0 %869, %v239
      %v871 = vpop.permute.xlu0 %870
      %872 = vset.pattern.permute.xlu0 2
      %873 = vperm.xlu0 %872, %v240
      %v874 = vpop.permute.xlu0 %873
      %875 = vset.pattern.permute.xlu0 2
      %876 = vperm.xlu0 %875, %v241
      %v877 = vpop.permute.xlu0 %876
      %878 = vset.pattern.permute.xlu0 2
      %879 = vperm.xlu0 %878, %v242
      %v880 = vpop.permute.xlu0 %879
      %881 = vset.pattern.permute.xlu0 2
      %882 = vperm.xlu0 %881, %v243
      %v883 = vpop.permute.xlu0 %882
      %884 = vset.pattern.permute.xlu0 2
      %885 = vperm.xlu0 %884, %v244
      %v886 = vpop.permute.xlu0 %885
      %887 = vset.pattern.permute.xlu0 2
      %888 = vperm.xlu0 %887, %v245
      %v889 = vpop.permute.xlu0 %888
      %vm890 = vcmp.eq.s32.totalorder %v247, %v844
      %vm891 = vcmp.eq.s32.totalorder %v247, %v847
      %vm892 = vcmp.eq.s32.totalorder %v247, %v850
      %vm893 = vcmp.eq.s32.totalorder %v247, %v853
      %vm894 = vcmp.eq.s32.totalorder %v247, %v856
      %vm895 = vcmp.eq.s32.totalorder %v247, %v859
      %vm896 = vcmp.eq.s32.totalorder %v247, %v862
      %vm897 = vcmp.eq.s32.totalorder %v247, %v865
      %vm898 = vcmp.eq.s32.totalorder %v247, %v868
      %vm899 = vcmp.eq.s32.totalorder %v247, %v871
      %vm900 = vcmp.eq.s32.totalorder %v247, %v874
      %vm901 = vcmp.eq.s32.totalorder %v247, %v877
      %vm902 = vcmp.eq.s32.totalorder %v247, %v880
      %vm903 = vcmp.eq.s32.totalorder %v247, %v883
      %vm904 = vcmp.eq.s32.totalorder %v247, %v886
      %vm905 = vcmp.eq.s32.totalorder %v247, %v889
      %v906 = vsel %vm890, 1, 0
      %v907 = vsel %vm891, 1, 0
      %v908 = vsel %vm892, 1, 0
      %v909 = vsel %vm893, 1, 0
      %v910 = vsel %vm894, 1, 0
      %v911 = vsel %vm895, 1, 0
      %v912 = vsel %vm896, 1, 0
      %v913 = vsel %vm897, 1, 0
      %v914 = vsel %vm898, 1, 0
      %v915 = vsel %vm899, 1, 0
      %v916 = vsel %vm900, 1, 0
      %v917 = vsel %vm901, 1, 0
      %v918 = vsel %vm902, 1, 0
      %v919 = vsel %vm903, 1, 0
      %v920 = vsel %vm904, 1, 0
      %v921 = vsel %vm905, 1, 0
      %v922 = vcvt.s32.f32 %v906
      %v923 = vcvt.s32.f32 %v907
      %v924 = vcvt.s32.f32 %v908
      %v925 = vcvt.s32.f32 %v909
      %v926 = vcvt.s32.f32 %v910
      %v927 = vcvt.s32.f32 %v911
      %v928 = vcvt.s32.f32 %v912
      %v929 = vcvt.s32.f32 %v913
      %v930 = vcvt.s32.f32 %v914
      %v931 = vcvt.s32.f32 %v915
      %v932 = vcvt.s32.f32 %v916
      %v933 = vcvt.s32.f32 %v917
      %v934 = vcvt.s32.f32 %v918
      %v935 = vcvt.s32.f32 %v919
      %v936 = vcvt.s32.f32 %v920
      %v937 = vcvt.s32.f32 %v921
      %s938 = scalar_lea.vmem %s1, 112
      %v939 = vld [vmem:[%s938] sm:$0xff]
      %v940 = vld [vmem:[%s938 + $0x8] sm:$0xff]
      %v941 = vld [vmem:[%s938 + $0x10] sm:$0xff]
      %v942 = vld [vmem:[%s938 + $0x18] sm:$0xff]
      %v943 = vld [vmem:[%s938 + $0x20] sm:$0xff]
      %v944 = vld [vmem:[%s938 + $0x28] sm:$0xff]
      %v945 = vld [vmem:[%s938 + $0x30] sm:$0xff]
      %v947 = vsel %vm455, %v922, 0
      %v950 = vsel %vm455, %v923, 0
      %v953 = vsel %vm455, %v924, 0
      %v956 = vsel %vm455, %v925, 0
      %v959 = vsel %vm455, %v926, 0
      %v962 = vsel %vm455, %v927, 0
      %v965 = vsel %vm455, %v928, 0
      %v968 = vsel %vm455, %v929, 0
      %v971 = vsel %vm455, %v930, 0
      %v974 = vsel %vm455, %v931, 0
      %v977 = vsel %vm455, %v932, 0
      %v980 = vsel %vm455, %v933, 0
      %v983 = vsel %vm455, %v934, 0
      %v986 = vsel %vm455, %v935, 0
      %v989 = vsel %vm455, %v936, 0
      %v992 = vsel %vm455, %v937, 0
      %994 = vmatprep.subr.mxu0 0.0
      %995 = vmatpush1.msra.mxu0 %v939
      %996 = vmatprep.subr.mxu0 0.0
      %997 = vmatpush1.msra.mxu0 %v940
      %998 = vmatprep.subr.mxu0 0.0
      %999 = vmatpush1.msra.mxu0 %v941
      %1000 = vmatprep.subr.mxu0 0.0
      %1001 = vmatpush1.msra.mxu0 %v942
      %1002 = vmatprep.subr.mxu0 0.0
      %1003 = vmatpush1.msra.mxu0 %v943
      %1004 = vmatprep.subr.mxu0 0.0
      %1005 = vmatpush1.msra.mxu0 %v944
      %1006 = vmatprep.subr.mxu0 0.0
      %1007 = vmatpush1.msra.mxu0 %v945
      %1008 = vmatprep.subr.mxu0 0.0
      %1009 = vmatpush1.msra.mxu0 0.0
      %1010 = vmatprep.subr.mxu0 0.0
      %1011 = vmatpush1.msra.mxu0 0.0
      %1012 = vmatprep.subr.mxu0 0.0
      %1013 = vmatpush1.msra.mxu0 0.0
      %1014 = vmatprep.subr.mxu0 0.0
      %1015 = vmatpush1.msra.mxu0 0.0
      %1016 = vmatprep.subr.mxu0 0.0
      %1017 = vmatpush1.msra.mxu0 0.0
      %1018 = vmatprep.subr.mxu0 0.0
      %1019 = vmatpush1.msra.mxu0 0.0
      %1020 = vmatprep.subr.mxu0 0.0
      %1021 = vmatpush1.msra.mxu0 0.0
      %1022 = vmatprep.subr.mxu0 0.0
      %1023 = vmatpush1.msra.mxu0 0.0
      %1024 = vmatprep.subr.mxu0 0.0
      %1025 = vmatpush1.msra.mxu0 0.0
      %1026 = vmatprep.subr.mxu0 0.0
      %1027 = vmatpush1.msra.mxu0 0.0
      %1028 = vmatprep.subr.mxu0 0.0
      %1029 = vmatpush1.msra.mxu0 0.0
      %1030 = vmatprep.subr.mxu0 0.0
      %1031 = vmatpush1.msra.mxu0 0.0
      %1032 = vmatprep.subr.mxu0 0.0
      %1033 = vmatpush1.msra.mxu0 0.0
      %1034 = vmatprep.subr.mxu0 0.0
      %1035 = vmatpush1.msra.mxu0 0.0
      %1036 = vmatprep.subr.mxu0 0.0
      %1037 = vmatpush1.msra.mxu0 0.0
      %1038 = vmatprep.subr.mxu0 0.0
      %1039 = vmatpush1.msra.mxu0 0.0
      %1040 = vmatprep.subr.mxu0 0.0
      %1041 = vmatpush1.msra.mxu0 0.0
      %1042 = vmatprep.subr.mxu0 0.0
      %1043 = vmatpush1.msra.mxu0 0.0
      %1044 = vmatprep.subr.mxu0 0.0
      %1045 = vmatpush1.msra.mxu0 0.0
      %1046 = vmatprep.subr.mxu0 0.0
      %1047 = vmatpush1.msra.mxu0 0.0
      %1048 = vmatprep.subr.mxu0 0.0
      %1049 = vmatpush1.msra.mxu0 0.0
      %1050 = vmatprep.subr.mxu0 0.0
      %1051 = vmatpush1.msra.mxu0 0.0
      %1052 = vmatprep.subr.mxu0 0.0
      %1053 = vmatpush1.msra.mxu0 0.0
      %1054 = vmatprep.subr.mxu0 0.0
      %1055 = vmatpush1.msra.mxu0 0.0
      %1056 = vmatprep.subr.mxu0 0.0
      %1057 = vmatpush1.msra.mxu0 0.0
      %1058 = vmatprep.mubr.f32.mxu0 0.0
      %1059 = vmatmul.mubr.f32.gmra.mrb[0].mxu0 %v947
      %v1060 = vpop.f32.mrb[0].mxu0
      %v1061 = vadd.f32 0.0, %v1060
      %v1062 = vpop.f32.mrb[0].mxu0
      %1063 = vmatprep.mubr.f32.mxu0 0.0
      %1064 = vmatmul.mubr.f32.gmra.mrb[0].mxu0 %v950
      %v1065 = vpop.f32.mrb[0].mxu0
      %v1066 = vadd.f32 0.0, %v1065
      %v1067 = vpop.f32.mrb[0].mxu0
      %1068 = vmatprep.mubr.f32.mxu0 0.0
      %1069 = vmatmul.mubr.f32.gmra.mrb[0].mxu0 %v953
      %v1070 = vpop.f32.mrb[0].mxu0
      %v1071 = vadd.f32 0.0, %v1070
      %v1072 = vpop.f32.mrb[0].mxu0
      %1073 = vmatprep.mubr.f32.mxu0 0.0
      %1074 = vmatmul.mubr.f32.gmra.mrb[0].mxu0 %v956
      %v1075 = vpop.f32.mrb[0].mxu0
      %v1076 = vadd.f32 0.0, %v1075
      %v1077 = vpop.f32.mrb[0].mxu0
      %1078 = vmatprep.mubr.f32.mxu0 0.0
      %1079 = vmatmul.mubr.f32.gmra.mrb[0].mxu0 %v959
      %v1080 = vpop.f32.mrb[0].mxu0
      %v1081 = vadd.f32 0.0, %v1080
      %v1082 = vpop.f32.mrb[0].mxu0
      %1083 = vmatprep.mubr.f32.mxu0 0.0
      %1084 = vmatmul.mubr.f32.gmra.mrb[0].mxu0 %v962
      %v1085 = vpop.f32.mrb[0].mxu0
      %v1086 = vadd.f32 0.0, %v1085
      %v1087 = vpop.f32.mrb[0].mxu0
      %1088 = vmatprep.mubr.f32.mxu0 0.0
      %1089 = vmatmul.mubr.f32.gmra.mrb[0].mxu0 %v965
      %v1090 = vpop.f32.mrb[0].mxu0
      %v1091 = vadd.f32 0.0, %v1090
      %v1092 = vpop.f32.mrb[0].mxu0
      %1093 = vmatprep.mubr.f32.mxu0 0.0
      %1094 = vmatmul.mubr.f32.gmra.mrb[0].mxu0 %v968
      %v1095 = vpop.f32.mrb[0].mxu0
      %v1096 = vadd.f32 0.0, %v1095
      %v1097 = vpop.f32.mrb[0].mxu0
      %1098 = vmatprep.mubr.f32.mxu0 0.0
      %1099 = vmatmul.mubr.f32.gmra.mrb[0].mxu0 %v971
      %v1100 = vpop.f32.mrb[0].mxu0
      %v1101 = vadd.f32 0.0, %v1100
      %v1102 = vpop.f32.mrb[0].mxu0
      %1103 = vmatprep.mubr.f32.mxu0 0.0
      %1104 = vmatmul.mubr.f32.gmra.mrb[0].mxu0 %v974
      %v1105 = vpop.f32.mrb[0].mxu0
      %v1106 = vadd.f32 0.0, %v1105
      %v1107 = vpop.f32.mrb[0].mxu0
      %1108 = vmatprep.mubr.f32.mxu0 0.0
      %1109 = vmatmul.mubr.f32.gmra.mrb[0].mxu0 %v977
      %v1110 = vpop.f32.mrb[0].mxu0
      %v1111 = vadd.f32 0.0, %v1110
      %v1112 = vpop.f32.mrb[0].mxu0
      %1113 = vmatprep.mubr.f32.mxu0 0.0
      %1114 = vmatmul.mubr.f32.gmra.mrb[0].mxu0 %v980
      %v1115 = vpop.f32.mrb[0].mxu0
      %v1116 = vadd.f32 0.0, %v1115
      %v1117 = vpop.f32.mrb[0].mxu0
      %1118 = vmatprep.mubr.f32.mxu0 0.0
      %1119 = vmatmul.mubr.f32.gmra.mrb[0].mxu0 %v983
      %v1120 = vpop.f32.mrb[0].mxu0
      %v1121 = vadd.f32 0.0, %v1120
      %v1122 = vpop.f32.mrb[0].mxu0
      %1123 = vmatprep.mubr.f32.mxu0 0.0
      %1124 = vmatmul.mubr.f32.gmra.mrb[0].mxu0 %v986
      %v1125 = vpop.f32.mrb[0].mxu0
      %v1126 = vadd.f32 0.0, %v1125
      %v1127 = vpop.f32.mrb[0].mxu0
      %1128 = vmatprep.mubr.f32.mxu0 0.0
      %1129 = vmatmul.mubr.f32.gmra.mrb[0].mxu0 %v989
      %v1130 = vpop.f32.mrb[0].mxu0
      %v1131 = vadd.f32 0.0, %v1130
      %v1132 = vpop.f32.mrb[0].mxu0
      %1133 = vmatprep.mubr.f32.mxu0 0.0
      %1134 = vmatmul.mubr.f32.gmra.mrb[0].mxu0 %v992
      %v1135 = vpop.f32.mrb[0].mxu0
      %v1136 = vadd.f32 0.0, %v1135
      %v1137 = vpop.f32.mrb[0].mxu0
      %1138 = vdwg.mxu0
      %v1139 = vadd.f32 %v764, %v1061
      %v1140 = vadd.f32 %v769, %v1066
      %v1141 = vadd.f32 %v774, %v1071
      %v1142 = vadd.f32 %v779, %v1076
      %v1143 = vadd.f32 %v784, %v1081
      %v1144 = vadd.f32 %v789, %v1086
      %v1145 = vadd.f32 %v794, %v1091
      %v1146 = vadd.f32 %v799, %v1096
      %v1147 = vadd.f32 %v804, %v1101
      %v1148 = vadd.f32 %v809, %v1106
      %v1149 = vadd.f32 %v814, %v1111
      %v1150 = vadd.f32 %v819, %v1116
      %v1151 = vadd.f32 %v824, %v1121
      %v1152 = vadd.f32 %v829, %v1126
      %v1153 = vadd.f32 %v834, %v1131
      %v1154 = vadd.f32 %v839, %v1136
      %1155 = vset.pattern.permute.xlu0 3
      %1156 = vperm.xlu0 %1155, %v230
      %v1157 = vpop.permute.xlu0 %1156
      %1158 = vset.pattern.permute.xlu0 3
      %1159 = vperm.xlu0 %1158, %v231
      %v1160 = vpop.permute.xlu0 %1159
      %1161 = vset.pattern.permute.xlu0 3
      %1162 = vperm.xlu0 %1161, %v232
      %v1163 = vpop.permute.xlu0 %1162
      %1164 = vset.pattern.permute.xlu0 3
      %1165 = vperm.xlu0 %1164, %v233
      %v1166 = vpop.permute.xlu0 %1165
      %1167 = vset.pattern.permute.xlu0 3
      %1168 = vperm.xlu0 %1167, %v234
      %v1169 = vpop.permute.xlu0 %1168
      %1170 = vset.pattern.permute.xlu0 3
      %1171 = vperm.xlu0 %1170, %v235
      %v1172 = vpop.permute.xlu0 %1171
      %1173 = vset.pattern.permute.xlu0 3
      %1174 = vperm.xlu0 %1173, %v236
      %v1175 = vpop.permute.xlu0 %1174
      %1176 = vset.pattern.permute.xlu0 3
      %1177 = vperm.xlu0 %1176, %v237
      %v1178 = vpop.permute.xlu0 %1177
      %1179 = vset.pattern.permute.xlu0 3
      %1180 = vperm.xlu0 %1179, %v238
      %v1181 = vpop.permute.xlu0 %1180
      %1182 = vset.pattern.permute.xlu0 3
      %1183 = vperm.xlu0 %1182, %v239
      %v1184 = vpop.permute.xlu0 %1183
      %1185 = vset.pattern.permute.xlu0 3
      %1186 = vperm.xlu0 %1185, %v240
      %v1187 = vpop.permute.xlu0 %1186
      %1188 = vset.pattern.permute.xlu0 3
      %1189 = vperm.xlu0 %1188, %v241
      %v1190 = vpop.permute.xlu0 %1189
      %1191 = vset.pattern.permute.xlu0 3
      %1192 = vperm.xlu0 %1191, %v242
      %v1193 = vpop.permute.xlu0 %1192
      %1194 = vset.pattern.permute.xlu0 3
      %1195 = vperm.xlu0 %1194, %v243
      %v1196 = vpop.permute.xlu0 %1195
      %1197 = vset.pattern.permute.xlu0 3
      %1198 = vperm.xlu0 %1197, %v244
      %v1199 = vpop.permute.xlu0 %1198
      %1200 = vset.pattern.permute.xlu0 3
      %1201 = vperm.xlu0 %1200, %v245
      %v1202 = vpop.permute.xlu0 %1201
      %vm1203 = vcmp.eq.s32.totalorder %v247, %v1157
      %vm1204 = vcmp.eq.s32.totalorder %v247, %v1160
      %vm1205 = vcmp.eq.s32.totalorder %v247, %v1163
      %vm1206 = vcmp.eq.s32.totalorder %v247, %v1166
      %vm1207 = vcmp.eq.s32.totalorder %v247, %v1169
      %vm1208 = vcmp.eq.s32.totalorder %v247, %v1172
      %vm1209 = vcmp.eq.s32.totalorder %v247, %v1175
      %vm1210 = vcmp.eq.s32.totalorder %v247, %v1178
      %vm1211 = vcmp.eq.s32.totalorder %v247, %v1181
      %vm1212 = vcmp.eq.s32.totalorder %v247, %v1184
      %vm1213 = vcmp.eq.s32.totalorder %v247, %v1187
      %vm1214 = vcmp.eq.s32.totalorder %v247, %v1190
      %vm1215 = vcmp.eq.s32.totalorder %v247, %v1193
      %vm1216 = vcmp.eq.s32.totalorder %v247, %v1196
      %vm1217 = vcmp.eq.s32.totalorder %v247, %v1199
      %vm1218 = vcmp.eq.s32.totalorder %v247, %v1202
      %v1219 = vsel %vm1203, 1, 0
      %v1220 = vsel %vm1204, 1, 0
      %v1221 = vsel %vm1205, 1, 0
      %v1222 = vsel %vm1206, 1, 0
      %v1223 = vsel %vm1207, 1, 0
      %v1224 = vsel %vm1208, 1, 0
      %v1225 = vsel %vm1209, 1, 0
      %v1226 = vsel %vm1210, 1, 0
      %v1227 = vsel %vm1211, 1, 0
      %v1228 = vsel %vm1212, 1, 0
      %v1229 = vsel %vm1213, 1, 0
      %v1230 = vsel %vm1214, 1, 0
      %v1231 = vsel %vm1215, 1, 0
      %v1232 = vsel %vm1216, 1, 0
      %v1233 = vsel %vm1217, 1, 0
      %v1234 = vsel %vm1218, 1, 0
      %v1235 = vcvt.s32.f32 %v1219
      %v1236 = vcvt.s32.f32 %v1220
      %v1237 = vcvt.s32.f32 %v1221
      %v1238 = vcvt.s32.f32 %v1222
      %v1239 = vcvt.s32.f32 %v1223
      %v1240 = vcvt.s32.f32 %v1224
      %v1241 = vcvt.s32.f32 %v1225
      %v1242 = vcvt.s32.f32 %v1226
      %v1243 = vcvt.s32.f32 %v1227
      %v1244 = vcvt.s32.f32 %v1228
      %v1245 = vcvt.s32.f32 %v1229
      %v1246 = vcvt.s32.f32 %v1230
      %v1247 = vcvt.s32.f32 %v1231
      %v1248 = vcvt.s32.f32 %v1232
      %v1249 = vcvt.s32.f32 %v1233
      %v1250 = vcvt.s32.f32 %v1234
      %s1251 = scalar_lea.vmem %s1, 168
      %v1252 = vld [vmem:[%s1251] sm:$0xff]
      %v1253 = vld [vmem:[%s1251 + $0x8] sm:$0xff]
      %v1254 = vld [vmem:[%s1251 + $0x10] sm:$0xff]
      %v1255 = vld [vmem:[%s1251 + $0x18] sm:$0xff]
      %v1256 = vld [vmem:[%s1251 + $0x20] sm:$0xff]
      %v1257 = vld [vmem:[%s1251 + $0x28] sm:$0xff]
      %v1258 = vld [vmem:[%s1251 + $0x30] sm:$0xff]
      %v1260 = vsel %vm455, %v1235, 0
      %v1263 = vsel %vm455, %v1236, 0
      %v1266 = vsel %vm455, %v1237, 0
      %v1269 = vsel %vm455, %v1238, 0
      %v1272 = vsel %vm455, %v1239, 0
      %v1275 = vsel %vm455, %v1240, 0
      %v1278 = vsel %vm455, %v1241, 0
      %v1281 = vsel %vm455, %v1242, 0
      %v1284 = vsel %vm455, %v1243, 0
      %v1287 = vsel %vm455, %v1244, 0
      %v1290 = vsel %vm455, %v1245, 0
      %v1293 = vsel %vm455, %v1246, 0
      %v1296 = vsel %vm455, %v1247, 0
      %v1299 = vsel %vm455, %v1248, 0
      %v1302 = vsel %vm455, %v1249, 0
      %v1305 = vsel %vm455, %v1250, 0
      %1307 = vmatprep.subr.mxu0 0.0
      %1308 = vmatpush1.msra.mxu0 %v1252
      %1309 = vmatprep.subr.mxu0 0.0
      %1310 = vmatpush1.msra.mxu0 %v1253
      %1311 = vmatprep.subr.mxu0 0.0
      %1312 = vmatpush1.msra.mxu0 %v1254
      %1313 = vmatprep.subr.mxu0 0.0
      %1314 = vmatpush1.msra.mxu0 %v1255
      %1315 = vmatprep.subr.mxu0 0.0
      %1316 = vmatpush1.msra.mxu0 %v1256
      %1317 = vmatprep.subr.mxu0 0.0
      %1318 = vmatpush1.msra.mxu0 %v1257
      %1319 = vmatprep.subr.mxu0 0.0
      %1320 = vmatpush1.msra.mxu0 %v1258
      %1321 = vmatprep.subr.mxu0 0.0
      %1322 = vmatpush1.msra.mxu0 0.0
      %1323 = vmatprep.subr.mxu0 0.0
      %1324 = vmatpush1.msra.mxu0 0.0
      %1325 = vmatprep.subr.mxu0 0.0
      %1326 = vmatpush1.msra.mxu0 0.0
      %1327 = vmatprep.subr.mxu0 0.0
      %1328 = vmatpush1.msra.mxu0 0.0
      %1329 = vmatprep.subr.mxu0 0.0
      %1330 = vmatpush1.msra.mxu0 0.0
      %1331 = vmatprep.subr.mxu0 0.0
      %1332 = vmatpush1.msra.mxu0 0.0
      %1333 = vmatprep.subr.mxu0 0.0
      %1334 = vmatpush1.msra.mxu0 0.0
      %1335 = vmatprep.subr.mxu0 0.0
      %1336 = vmatpush1.msra.mxu0 0.0
      %1337 = vmatprep.subr.mxu0 0.0
      %1338 = vmatpush1.msra.mxu0 0.0
      %1339 = vmatprep.subr.mxu0 0.0
      %1340 = vmatpush1.msra.mxu0 0.0
      %1341 = vmatprep.subr.mxu0 0.0
      %1342 = vmatpush1.msra.mxu0 0.0
      %1343 = vmatprep.subr.mxu0 0.0
      %1344 = vmatpush1.msra.mxu0 0.0
      %1345 = vmatprep.subr.mxu0 0.0
      %1346 = vmatpush1.msra.mxu0 0.0
      %1347 = vmatprep.subr.mxu0 0.0
      %1348 = vmatpush1.msra.mxu0 0.0
      %1349 = vmatprep.subr.mxu0 0.0
      %1350 = vmatpush1.msra.mxu0 0.0
      %1351 = vmatprep.subr.mxu0 0.0
      %1352 = vmatpush1.msra.mxu0 0.0
      %1353 = vmatprep.subr.mxu0 0.0
      %1354 = vmatpush1.msra.mxu0 0.0
      %1355 = vmatprep.subr.mxu0 0.0
      %1356 = vmatpush1.msra.mxu0 0.0
      %1357 = vmatprep.subr.mxu0 0.0
      %1358 = vmatpush1.msra.mxu0 0.0
      %1359 = vmatprep.subr.mxu0 0.0
      %1360 = vmatpush1.msra.mxu0 0.0
      %1361 = vmatprep.subr.mxu0 0.0
      %1362 = vmatpush1.msra.mxu0 0.0
      %1363 = vmatprep.subr.mxu0 0.0
      %1364 = vmatpush1.msra.mxu0 0.0
      %1365 = vmatprep.subr.mxu0 0.0
      %1366 = vmatpush1.msra.mxu0 0.0
      %1367 = vmatprep.subr.mxu0 0.0
      %1368 = vmatpush1.msra.mxu0 0.0
      %1369 = vmatprep.subr.mxu0 0.0
      %1370 = vmatpush1.msra.mxu0 0.0
      %1371 = vmatprep.mubr.f32.mxu0 0.0
      %1372 = vmatmul.mubr.f32.gmra.mrb[0].mxu0 %v1260
      %v1373 = vpop.f32.mrb[0].mxu0
      %v1374 = vadd.f32 0.0, %v1373
      %v1375 = vpop.f32.mrb[0].mxu0
      %1376 = vmatprep.mubr.f32.mxu0 0.0
      %1377 = vmatmul.mubr.f32.gmra.mrb[0].mxu0 %v1263
      %v1378 = vpop.f32.mrb[0].mxu0
      %v1379 = vadd.f32 0.0, %v1378
      %v1380 = vpop.f32.mrb[0].mxu0
      %1381 = vmatprep.mubr.f32.mxu0 0.0
      %1382 = vmatmul.mubr.f32.gmra.mrb[0].mxu0 %v1266
      %v1383 = vpop.f32.mrb[0].mxu0
      %v1384 = vadd.f32 0.0, %v1383
      %v1385 = vpop.f32.mrb[0].mxu0
      %1386 = vmatprep.mubr.f32.mxu0 0.0
      %1387 = vmatmul.mubr.f32.gmra.mrb[0].mxu0 %v1269
      %v1388 = vpop.f32.mrb[0].mxu0
      %v1389 = vadd.f32 0.0, %v1388
      %v1390 = vpop.f32.mrb[0].mxu0
      %1391 = vmatprep.mubr.f32.mxu0 0.0
      %1392 = vmatmul.mubr.f32.gmra.mrb[0].mxu0 %v1272
      %v1393 = vpop.f32.mrb[0].mxu0
      %v1394 = vadd.f32 0.0, %v1393
      %v1395 = vpop.f32.mrb[0].mxu0
      %1396 = vmatprep.mubr.f32.mxu0 0.0
      %1397 = vmatmul.mubr.f32.gmra.mrb[0].mxu0 %v1275
      %v1398 = vpop.f32.mrb[0].mxu0
      %v1399 = vadd.f32 0.0, %v1398
      %v1400 = vpop.f32.mrb[0].mxu0
      %1401 = vmatprep.mubr.f32.mxu0 0.0
      %1402 = vmatmul.mubr.f32.gmra.mrb[0].mxu0 %v1278
      %v1403 = vpop.f32.mrb[0].mxu0
      %v1404 = vadd.f32 0.0, %v1403
      %v1405 = vpop.f32.mrb[0].mxu0
      %1406 = vmatprep.mubr.f32.mxu0 0.0
      %1407 = vmatmul.mubr.f32.gmra.mrb[0].mxu0 %v1281
      %v1408 = vpop.f32.mrb[0].mxu0
      %v1409 = vadd.f32 0.0, %v1408
      %v1410 = vpop.f32.mrb[0].mxu0
      %1411 = vmatprep.mubr.f32.mxu0 0.0
      %1412 = vmatmul.mubr.f32.gmra.mrb[0].mxu0 %v1284
      %v1413 = vpop.f32.mrb[0].mxu0
      %v1414 = vadd.f32 0.0, %v1413
      %v1415 = vpop.f32.mrb[0].mxu0
      %1416 = vmatprep.mubr.f32.mxu0 0.0
      %1417 = vmatmul.mubr.f32.gmra.mrb[0].mxu0 %v1287
      %v1418 = vpop.f32.mrb[0].mxu0
      %v1419 = vadd.f32 0.0, %v1418
      %v1420 = vpop.f32.mrb[0].mxu0
      %1421 = vmatprep.mubr.f32.mxu0 0.0
      %1422 = vmatmul.mubr.f32.gmra.mrb[0].mxu0 %v1290
      %v1423 = vpop.f32.mrb[0].mxu0
      %v1424 = vadd.f32 0.0, %v1423
      %v1425 = vpop.f32.mrb[0].mxu0
      %1426 = vmatprep.mubr.f32.mxu0 0.0
      %1427 = vmatmul.mubr.f32.gmra.mrb[0].mxu0 %v1293
      %v1428 = vpop.f32.mrb[0].mxu0
      %v1429 = vadd.f32 0.0, %v1428
      %v1430 = vpop.f32.mrb[0].mxu0
      %1431 = vmatprep.mubr.f32.mxu0 0.0
      %1432 = vmatmul.mubr.f32.gmra.mrb[0].mxu0 %v1296
      %v1433 = vpop.f32.mrb[0].mxu0
      %v1434 = vadd.f32 0.0, %v1433
      %v1435 = vpop.f32.mrb[0].mxu0
      %1436 = vmatprep.mubr.f32.mxu0 0.0
      %1437 = vmatmul.mubr.f32.gmra.mrb[0].mxu0 %v1299
      %v1438 = vpop.f32.mrb[0].mxu0
      %v1439 = vadd.f32 0.0, %v1438
      %v1440 = vpop.f32.mrb[0].mxu0
      %1441 = vmatprep.mubr.f32.mxu0 0.0
      %1442 = vmatmul.mubr.f32.gmra.mrb[0].mxu0 %v1302
      %v1443 = vpop.f32.mrb[0].mxu0
      %v1444 = vadd.f32 0.0, %v1443
      %v1445 = vpop.f32.mrb[0].mxu0
      %1446 = vmatprep.mubr.f32.mxu0 0.0
      %1447 = vmatmul.mubr.f32.gmra.mrb[0].mxu0 %v1305
      %v1448 = vpop.f32.mrb[0].mxu0
      %v1449 = vadd.f32 0.0, %v1448
      %v1450 = vpop.f32.mrb[0].mxu0
      %1451 = vdwg.mxu0
      %v1452 = vadd.f32 %v1139, %v1374
      %v1453 = vadd.f32 %v1140, %v1379
      %v1454 = vadd.f32 %v1141, %v1384
      %v1455 = vadd.f32 %v1142, %v1389
      %v1456 = vadd.f32 %v1143, %v1394
      %v1457 = vadd.f32 %v1144, %v1399
      %v1458 = vadd.f32 %v1145, %v1404
      %v1459 = vadd.f32 %v1146, %v1409
      %v1460 = vadd.f32 %v1147, %v1414
      %v1461 = vadd.f32 %v1148, %v1419
      %v1462 = vadd.f32 %v1149, %v1424
      %v1463 = vadd.f32 %v1150, %v1429
      %v1464 = vadd.f32 %v1151, %v1434
      %v1465 = vadd.f32 %v1152, %v1439
      %v1466 = vadd.f32 %v1153, %v1444
      %v1467 = vadd.f32 %v1154, %v1449
      %1468 = vset.pattern.permute.xlu0 4
      %1469 = vperm.xlu0 %1468, %v230
      %v1470 = vpop.permute.xlu0 %1469
      %1471 = vset.pattern.permute.xlu0 4
      %1472 = vperm.xlu0 %1471, %v231
      %v1473 = vpop.permute.xlu0 %1472
      %1474 = vset.pattern.permute.xlu0 4
      %1475 = vperm.xlu0 %1474, %v232
      %v1476 = vpop.permute.xlu0 %1475
      %1477 = vset.pattern.permute.xlu0 4
      %1478 = vperm.xlu0 %1477, %v233
      %v1479 = vpop.permute.xlu0 %1478
      %1480 = vset.pattern.permute.xlu0 4
      %1481 = vperm.xlu0 %1480, %v234
      %v1482 = vpop.permute.xlu0 %1481
      %1483 = vset.pattern.permute.xlu0 4
      %1484 = vperm.xlu0 %1483, %v235
      %v1485 = vpop.permute.xlu0 %1484
      %1486 = vset.pattern.permute.xlu0 4
      %1487 = vperm.xlu0 %1486, %v236
      %v1488 = vpop.permute.xlu0 %1487
      %1489 = vset.pattern.permute.xlu0 4
      %1490 = vperm.xlu0 %1489, %v237
      %v1491 = vpop.permute.xlu0 %1490
      %1492 = vset.pattern.permute.xlu0 4
      %1493 = vperm.xlu0 %1492, %v238
      %v1494 = vpop.permute.xlu0 %1493
      %1495 = vset.pattern.permute.xlu0 4
      %1496 = vperm.xlu0 %1495, %v239
      %v1497 = vpop.permute.xlu0 %1496
      %1498 = vset.pattern.permute.xlu0 4
      %1499 = vperm.xlu0 %1498, %v240
      %v1500 = vpop.permute.xlu0 %1499
      %1501 = vset.pattern.permute.xlu0 4
      %1502 = vperm.xlu0 %1501, %v241
      %v1503 = vpop.permute.xlu0 %1502
      %1504 = vset.pattern.permute.xlu0 4
      %1505 = vperm.xlu0 %1504, %v242
      %v1506 = vpop.permute.xlu0 %1505
      %1507 = vset.pattern.permute.xlu0 4
      %1508 = vperm.xlu0 %1507, %v243
      %v1509 = vpop.permute.xlu0 %1508
      %1510 = vset.pattern.permute.xlu0 4
      %1511 = vperm.xlu0 %1510, %v244
      %v1512 = vpop.permute.xlu0 %1511
      %1513 = vset.pattern.permute.xlu0 4
      %1514 = vperm.xlu0 %1513, %v245
      %v1515 = vpop.permute.xlu0 %1514
      %vm1516 = vcmp.eq.s32.totalorder %v247, %v1470
      %vm1517 = vcmp.eq.s32.totalorder %v247, %v1473
      %vm1518 = vcmp.eq.s32.totalorder %v247, %v1476
      %vm1519 = vcmp.eq.s32.totalorder %v247, %v1479
      %vm1520 = vcmp.eq.s32.totalorder %v247, %v1482
      %vm1521 = vcmp.eq.s32.totalorder %v247, %v1485
      %vm1522 = vcmp.eq.s32.totalorder %v247, %v1488
      %vm1523 = vcmp.eq.s32.totalorder %v247, %v1491
      %vm1524 = vcmp.eq.s32.totalorder %v247, %v1494
      %vm1525 = vcmp.eq.s32.totalorder %v247, %v1497
      %vm1526 = vcmp.eq.s32.totalorder %v247, %v1500
      %vm1527 = vcmp.eq.s32.totalorder %v247, %v1503
      %vm1528 = vcmp.eq.s32.totalorder %v247, %v1506
      %vm1529 = vcmp.eq.s32.totalorder %v247, %v1509
      %vm1530 = vcmp.eq.s32.totalorder %v247, %v1512
      %vm1531 = vcmp.eq.s32.totalorder %v247, %v1515
      %v1532 = vsel %vm1516, 1, 0
      %v1533 = vsel %vm1517, 1, 0
      %v1534 = vsel %vm1518, 1, 0
      %v1535 = vsel %vm1519, 1, 0
      %v1536 = vsel %vm1520, 1, 0
      %v1537 = vsel %vm1521, 1, 0
      %v1538 = vsel %vm1522, 1, 0
      %v1539 = vsel %vm1523, 1, 0
      %v1540 = vsel %vm1524, 1, 0
      %v1541 = vsel %vm1525, 1, 0
      %v1542 = vsel %vm1526, 1, 0
      %v1543 = vsel %vm1527, 1, 0
      %v1544 = vsel %vm1528, 1, 0
      %v1545 = vsel %vm1529, 1, 0
      %v1546 = vsel %vm1530, 1, 0
      %v1547 = vsel %vm1531, 1, 0
      %v1548 = vcvt.s32.f32 %v1532
      %v1549 = vcvt.s32.f32 %v1533
      %v1550 = vcvt.s32.f32 %v1534
      %v1551 = vcvt.s32.f32 %v1535
      %v1552 = vcvt.s32.f32 %v1536
      %v1553 = vcvt.s32.f32 %v1537
      %v1554 = vcvt.s32.f32 %v1538
      %v1555 = vcvt.s32.f32 %v1539
      %v1556 = vcvt.s32.f32 %v1540
      %v1557 = vcvt.s32.f32 %v1541
      %v1558 = vcvt.s32.f32 %v1542
      %v1559 = vcvt.s32.f32 %v1543
      %v1560 = vcvt.s32.f32 %v1544
      %v1561 = vcvt.s32.f32 %v1545
      %v1562 = vcvt.s32.f32 %v1546
      %v1563 = vcvt.s32.f32 %v1547
      %s1564 = scalar_lea.vmem %s1, 224
      %v1565 = vld [vmem:[%s1564] sm:$0xff]
      %v1566 = vld [vmem:[%s1564 + $0x8] sm:$0xff]
      %v1567 = vld [vmem:[%s1564 + $0x10] sm:$0xff]
      %v1568 = vld [vmem:[%s1564 + $0x18] sm:$0xff]
      %v1569 = vld [vmem:[%s1564 + $0x20] sm:$0xff]
      %v1570 = vld [vmem:[%s1564 + $0x28] sm:$0xff]
      %v1571 = vld [vmem:[%s1564 + $0x30] sm:$0xff]
      %v1573 = vsel %vm455, %v1548, 0
      %v1576 = vsel %vm455, %v1549, 0
      %v1579 = vsel %vm455, %v1550, 0
      %v1582 = vsel %vm455, %v1551, 0
      %v1585 = vsel %vm455, %v1552, 0
      %v1588 = vsel %vm455, %v1553, 0
      %v1591 = vsel %vm455, %v1554, 0
      %v1594 = vsel %vm455, %v1555, 0
      %v1597 = vsel %vm455, %v1556, 0
      %v1600 = vsel %vm455, %v1557, 0
      %v1603 = vsel %vm455, %v1558, 0
      %v1606 = vsel %vm455, %v1559, 0
      %v1609 = vsel %vm455, %v1560, 0
      %v1612 = vsel %vm455, %v1561, 0
      %v1615 = vsel %vm455, %v1562, 0
      %v1618 = vsel %vm455, %v1563, 0
      %1620 = vmatprep.subr.mxu0 0.0
      %1621 = vmatpush1.msra.mxu0 %v1565
      %1622 = vmatprep.subr.mxu0 0.0
      %1623 = vmatpush1.msra.mxu0 %v1566
      %1624 = vmatprep.subr.mxu0 0.0
      %1625 = vmatpush1.msra.mxu0 %v1567
      %1626 = vmatprep.subr.mxu0 0.0
      %1627 = vmatpush1.msra.mxu0 %v1568
      %1628 = vmatprep.subr.mxu0 0.0
      %1629 = vmatpush1.msra.mxu0 %v1569
      %1630 = vmatprep.subr.mxu0 0.0
      %1631 = vmatpush1.msra.mxu0 %v1570
      %1632 = vmatprep.subr.mxu0 0.0
      %1633 = vmatpush1.msra.mxu0 %v1571
      %1634 = vmatprep.subr.mxu0 0.0
      %1635 = vmatpush1.msra.mxu0 0.0
      %1636 = vmatprep.subr.mxu0 0.0
      %1637 = vmatpush1.msra.mxu0 0.0
      %1638 = vmatprep.subr.mxu0 0.0
      %1639 = vmatpush1.msra.mxu0 0.0
      %1640 = vmatprep.subr.mxu0 0.0
      %1641 = vmatpush1.msra.mxu0 0.0
      %1642 = vmatprep.subr.mxu0 0.0
      %1643 = vmatpush1.msra.mxu0 0.0
      %1644 = vmatprep.subr.mxu0 0.0
      %1645 = vmatpush1.msra.mxu0 0.0
      %1646 = vmatprep.subr.mxu0 0.0
      %1647 = vmatpush1.msra.mxu0 0.0
      %1648 = vmatprep.subr.mxu0 0.0
      %1649 = vmatpush1.msra.mxu0 0.0
      %1650 = vmatprep.subr.mxu0 0.0
      %1651 = vmatpush1.msra.mxu0 0.0
      %1652 = vmatprep.subr.mxu0 0.0
      %1653 = vmatpush1.msra.mxu0 0.0
      %1654 = vmatprep.subr.mxu0 0.0
      %1655 = vmatpush1.msra.mxu0 0.0
      %1656 = vmatprep.subr.mxu0 0.0
      %1657 = vmatpush1.msra.mxu0 0.0
      %1658 = vmatprep.subr.mxu0 0.0
      %1659 = vmatpush1.msra.mxu0 0.0
      %1660 = vmatprep.subr.mxu0 0.0
      %1661 = vmatpush1.msra.mxu0 0.0
      %1662 = vmatprep.subr.mxu0 0.0
      %1663 = vmatpush1.msra.mxu0 0.0
      %1664 = vmatprep.subr.mxu0 0.0
      %1665 = vmatpush1.msra.mxu0 0.0
      %1666 = vmatprep.subr.mxu0 0.0
      %1667 = vmatpush1.msra.mxu0 0.0
      %1668 = vmatprep.subr.mxu0 0.0
      %1669 = vmatpush1.msra.mxu0 0.0
      %1670 = vmatprep.subr.mxu0 0.0
      %1671 = vmatpush1.msra.mxu0 0.0
      %1672 = vmatprep.subr.mxu0 0.0
      %1673 = vmatpush1.msra.mxu0 0.0
      %1674 = vmatprep.subr.mxu0 0.0
      %1675 = vmatpush1.msra.mxu0 0.0
      %1676 = vmatprep.subr.mxu0 0.0
      %1677 = vmatpush1.msra.mxu0 0.0
      %1678 = vmatprep.subr.mxu0 0.0
      %1679 = vmatpush1.msra.mxu0 0.0
      %1680 = vmatprep.subr.mxu0 0.0
      %1681 = vmatpush1.msra.mxu0 0.0
      %1682 = vmatprep.subr.mxu0 0.0
      %1683 = vmatpush1.msra.mxu0 0.0
      %1684 = vmatprep.mubr.f32.mxu0 0.0
      %1685 = vmatmul.mubr.f32.gmra.mrb[0].mxu0 %v1573
      %v1686 = vpop.f32.mrb[0].mxu0
      %v1687 = vadd.f32 0.0, %v1686
      %v1688 = vpop.f32.mrb[0].mxu0
      %1689 = vmatprep.mubr.f32.mxu0 0.0
      %1690 = vmatmul.mubr.f32.gmra.mrb[0].mxu0 %v1576
      %v1691 = vpop.f32.mrb[0].mxu0
      %v1692 = vadd.f32 0.0, %v1691
      %v1693 = vpop.f32.mrb[0].mxu0
      %1694 = vmatprep.mubr.f32.mxu0 0.0
      %1695 = vmatmul.mubr.f32.gmra.mrb[0].mxu0 %v1579
      %v1696 = vpop.f32.mrb[0].mxu0
      %v1697 = vadd.f32 0.0, %v1696
      %v1698 = vpop.f32.mrb[0].mxu0
      %1699 = vmatprep.mubr.f32.mxu0 0.0
      %1700 = vmatmul.mubr.f32.gmra.mrb[0].mxu0 %v1582
      %v1701 = vpop.f32.mrb[0].mxu0
      %v1702 = vadd.f32 0.0, %v1701
      %v1703 = vpop.f32.mrb[0].mxu0
      %1704 = vmatprep.mubr.f32.mxu0 0.0
      %1705 = vmatmul.mubr.f32.gmra.mrb[0].mxu0 %v1585
      %v1706 = vpop.f32.mrb[0].mxu0
      %v1707 = vadd.f32 0.0, %v1706
      %v1708 = vpop.f32.mrb[0].mxu0
      %1709 = vmatprep.mubr.f32.mxu0 0.0
      %1710 = vmatmul.mubr.f32.gmra.mrb[0].mxu0 %v1588
      %v1711 = vpop.f32.mrb[0].mxu0
      %v1712 = vadd.f32 0.0, %v1711
      %v1713 = vpop.f32.mrb[0].mxu0
      %1714 = vmatprep.mubr.f32.mxu0 0.0
      %1715 = vmatmul.mubr.f32.gmra.mrb[0].mxu0 %v1591
      %v1716 = vpop.f32.mrb[0].mxu0
      %v1717 = vadd.f32 0.0, %v1716
      %v1718 = vpop.f32.mrb[0].mxu0
      %1719 = vmatprep.mubr.f32.mxu0 0.0
      %1720 = vmatmul.mubr.f32.gmra.mrb[0].mxu0 %v1594
      %v1721 = vpop.f32.mrb[0].mxu0
      %v1722 = vadd.f32 0.0, %v1721
      %v1723 = vpop.f32.mrb[0].mxu0
      %1724 = vmatprep.mubr.f32.mxu0 0.0
      %1725 = vmatmul.mubr.f32.gmra.mrb[0].mxu0 %v1597
      %v1726 = vpop.f32.mrb[0].mxu0
      %v1727 = vadd.f32 0.0, %v1726
      %v1728 = vpop.f32.mrb[0].mxu0
      %1729 = vmatprep.mubr.f32.mxu0 0.0
      %1730 = vmatmul.mubr.f32.gmra.mrb[0].mxu0 %v1600
      %v1731 = vpop.f32.mrb[0].mxu0
      %v1732 = vadd.f32 0.0, %v1731
      %v1733 = vpop.f32.mrb[0].mxu0
      %1734 = vmatprep.mubr.f32.mxu0 0.0
      %1735 = vmatmul.mubr.f32.gmra.mrb[0].mxu0 %v1603
      %v1736 = vpop.f32.mrb[0].mxu0
      %v1737 = vadd.f32 0.0, %v1736
      %v1738 = vpop.f32.mrb[0].mxu0
      %1739 = vmatprep.mubr.f32.mxu0 0.0
      %1740 = vmatmul.mubr.f32.gmra.mrb[0].mxu0 %v1606
      %v1741 = vpop.f32.mrb[0].mxu0
      %v1742 = vadd.f32 0.0, %v1741
      %v1743 = vpop.f32.mrb[0].mxu0
      %1744 = vmatprep.mubr.f32.mxu0 0.0
      %1745 = vmatmul.mubr.f32.gmra.mrb[0].mxu0 %v1609
      %v1746 = vpop.f32.mrb[0].mxu0
      %v1747 = vadd.f32 0.0, %v1746
      %v1748 = vpop.f32.mrb[0].mxu0
      %1749 = vmatprep.mubr.f32.mxu0 0.0
      %1750 = vmatmul.mubr.f32.gmra.mrb[0].mxu0 %v1612
      %v1751 = vpop.f32.mrb[0].mxu0
      %v1752 = vadd.f32 0.0, %v1751
      %v1753 = vpop.f32.mrb[0].mxu0
      %1754 = vmatprep.mubr.f32.mxu0 0.0
      %1755 = vmatmul.mubr.f32.gmra.mrb[0].mxu0 %v1615
      %v1756 = vpop.f32.mrb[0].mxu0
      %v1757 = vadd.f32 0.0, %v1756
      %v1758 = vpop.f32.mrb[0].mxu0
      %1759 = vmatprep.mubr.f32.mxu0 0.0
      %1760 = vmatmul.mubr.f32.gmra.mrb[0].mxu0 %v1618
      %v1761 = vpop.f32.mrb[0].mxu0
      %v1762 = vadd.f32 0.0, %v1761
      %v1763 = vpop.f32.mrb[0].mxu0
      %1764 = vdwg.mxu0
      %v1765 = vadd.f32 %v1452, %v1687
      %v1766 = vadd.f32 %v1453, %v1692
      %v1767 = vadd.f32 %v1454, %v1697
      %v1768 = vadd.f32 %v1455, %v1702
      %v1769 = vadd.f32 %v1456, %v1707
      %v1770 = vadd.f32 %v1457, %v1712
      %v1771 = vadd.f32 %v1458, %v1717
      %v1772 = vadd.f32 %v1459, %v1722
      %v1773 = vadd.f32 %v1460, %v1727
      %v1774 = vadd.f32 %v1461, %v1732
      %v1775 = vadd.f32 %v1462, %v1737
      %v1776 = vadd.f32 %v1463, %v1742
      %v1777 = vadd.f32 %v1464, %v1747
      %v1778 = vadd.f32 %v1465, %v1752
      %v1779 = vadd.f32 %v1466, %v1757
      %v1780 = vadd.f32 %v1467, %v1762
      %1781 = vset.pattern.permute.xlu0 5
      %1782 = vperm.xlu0 %1781, %v230
      %v1783 = vpop.permute.xlu0 %1782
      %1784 = vset.pattern.permute.xlu0 5
      %1785 = vperm.xlu0 %1784, %v231
      %v1786 = vpop.permute.xlu0 %1785
      %1787 = vset.pattern.permute.xlu0 5
      %1788 = vperm.xlu0 %1787, %v232
      %v1789 = vpop.permute.xlu0 %1788
      %1790 = vset.pattern.permute.xlu0 5
      %1791 = vperm.xlu0 %1790, %v233
      %v1792 = vpop.permute.xlu0 %1791
      %1793 = vset.pattern.permute.xlu0 5
      %1794 = vperm.xlu0 %1793, %v234
      %v1795 = vpop.permute.xlu0 %1794
      %1796 = vset.pattern.permute.xlu0 5
      %1797 = vperm.xlu0 %1796, %v235
      %v1798 = vpop.permute.xlu0 %1797
      %1799 = vset.pattern.permute.xlu0 5
      %1800 = vperm.xlu0 %1799, %v236
      %v1801 = vpop.permute.xlu0 %1800
      %1802 = vset.pattern.permute.xlu0 5
      %1803 = vperm.xlu0 %1802, %v237
      %v1804 = vpop.permute.xlu0 %1803
      %1805 = vset.pattern.permute.xlu0 5
      %1806 = vperm.xlu0 %1805, %v238
      %v1807 = vpop.permute.xlu0 %1806
      %1808 = vset.pattern.permute.xlu0 5
      %1809 = vperm.xlu0 %1808, %v239
      %v1810 = vpop.permute.xlu0 %1809
      %1811 = vset.pattern.permute.xlu0 5
      %1812 = vperm.xlu0 %1811, %v240
      %v1813 = vpop.permute.xlu0 %1812
      %1814 = vset.pattern.permute.xlu0 5
      %1815 = vperm.xlu0 %1814, %v241
      %v1816 = vpop.permute.xlu0 %1815
      %1817 = vset.pattern.permute.xlu0 5
      %1818 = vperm.xlu0 %1817, %v242
      %v1819 = vpop.permute.xlu0 %1818
      %1820 = vset.pattern.permute.xlu0 5
      %1821 = vperm.xlu0 %1820, %v243
      %v1822 = vpop.permute.xlu0 %1821
      %1823 = vset.pattern.permute.xlu0 5
      %1824 = vperm.xlu0 %1823, %v244
      %v1825 = vpop.permute.xlu0 %1824
      %1826 = vset.pattern.permute.xlu0 5
      %1827 = vperm.xlu0 %1826, %v245
      %v1828 = vpop.permute.xlu0 %1827
      %vm1829 = vcmp.eq.s32.totalorder %v247, %v1783
      %vm1830 = vcmp.eq.s32.totalorder %v247, %v1786
      %vm1831 = vcmp.eq.s32.totalorder %v247, %v1789
      %vm1832 = vcmp.eq.s32.totalorder %v247, %v1792
      %vm1833 = vcmp.eq.s32.totalorder %v247, %v1795
      %vm1834 = vcmp.eq.s32.totalorder %v247, %v1798
      %vm1835 = vcmp.eq.s32.totalorder %v247, %v1801
      %vm1836 = vcmp.eq.s32.totalorder %v247, %v1804
      %vm1837 = vcmp.eq.s32.totalorder %v247, %v1807
      %vm1838 = vcmp.eq.s32.totalorder %v247, %v1810
      %vm1839 = vcmp.eq.s32.totalorder %v247, %v1813
      %vm1840 = vcmp.eq.s32.totalorder %v247, %v1816
      %vm1841 = vcmp.eq.s32.totalorder %v247, %v1819
      %vm1842 = vcmp.eq.s32.totalorder %v247, %v1822
      %vm1843 = vcmp.eq.s32.totalorder %v247, %v1825
      %vm1844 = vcmp.eq.s32.totalorder %v247, %v1828
      %v1845 = vsel %vm1829, 1, 0
      %v1846 = vsel %vm1830, 1, 0
      %v1847 = vsel %vm1831, 1, 0
      %v1848 = vsel %vm1832, 1, 0
      %v1849 = vsel %vm1833, 1, 0
      %v1850 = vsel %vm1834, 1, 0
      %v1851 = vsel %vm1835, 1, 0
      %v1852 = vsel %vm1836, 1, 0
      %v1853 = vsel %vm1837, 1, 0
      %v1854 = vsel %vm1838, 1, 0
      %v1855 = vsel %vm1839, 1, 0
      %v1856 = vsel %vm1840, 1, 0
      %v1857 = vsel %vm1841, 1, 0
      %v1858 = vsel %vm1842, 1, 0
      %v1859 = vsel %vm1843, 1, 0
      %v1860 = vsel %vm1844, 1, 0
      %v1861 = vcvt.s32.f32 %v1845
      %v1862 = vcvt.s32.f32 %v1846
      %v1863 = vcvt.s32.f32 %v1847
      %v1864 = vcvt.s32.f32 %v1848
      %v1865 = vcvt.s32.f32 %v1849
      %v1866 = vcvt.s32.f32 %v1850
      %v1867 = vcvt.s32.f32 %v1851
      %v1868 = vcvt.s32.f32 %v1852
      %v1869 = vcvt.s32.f32 %v1853
      %v1870 = vcvt.s32.f32 %v1854
      %v1871 = vcvt.s32.f32 %v1855
      %v1872 = vcvt.s32.f32 %v1856
      %v1873 = vcvt.s32.f32 %v1857
      %v1874 = vcvt.s32.f32 %v1858
      %v1875 = vcvt.s32.f32 %v1859
      %v1876 = vcvt.s32.f32 %v1860
      %s1877 = scalar_lea.vmem %s1, 280
      %v1878 = vld [vmem:[%s1877] sm:$0xff]
      %v1879 = vld [vmem:[%s1877 + $0x8] sm:$0xff]
      %v1880 = vld [vmem:[%s1877 + $0x10] sm:$0xff]
      %v1881 = vld [vmem:[%s1877 + $0x18] sm:$0xff]
      %v1882 = vld [vmem:[%s1877 + $0x20] sm:$0xff]
      %v1883 = vld [vmem:[%s1877 + $0x28] sm:$0xff]
      %v1884 = vld [vmem:[%s1877 + $0x30] sm:$0xff]
      %v1886 = vsel %vm455, %v1861, 0
      %v1889 = vsel %vm455, %v1862, 0
      %v1892 = vsel %vm455, %v1863, 0
      %v1895 = vsel %vm455, %v1864, 0
      %v1898 = vsel %vm455, %v1865, 0
      %v1901 = vsel %vm455, %v1866, 0
      %v1904 = vsel %vm455, %v1867, 0
      %v1907 = vsel %vm455, %v1868, 0
      %v1910 = vsel %vm455, %v1869, 0
      %v1913 = vsel %vm455, %v1870, 0
      %v1916 = vsel %vm455, %v1871, 0
      %v1919 = vsel %vm455, %v1872, 0
      %v1922 = vsel %vm455, %v1873, 0
      %v1925 = vsel %vm455, %v1874, 0
      %v1928 = vsel %vm455, %v1875, 0
      %v1931 = vsel %vm455, %v1876, 0
      %1933 = vmatprep.subr.mxu0 0.0
      %1934 = vmatpush1.msra.mxu0 %v1878
      %1935 = vmatprep.subr.mxu0 0.0
      %1936 = vmatpush1.msra.mxu0 %v1879
      %1937 = vmatprep.subr.mxu0 0.0
      %1938 = vmatpush1.msra.mxu0 %v1880
      %1939 = vmatprep.subr.mxu0 0.0
      %1940 = vmatpush1.msra.mxu0 %v1881
      %1941 = vmatprep.subr.mxu0 0.0
      %1942 = vmatpush1.msra.mxu0 %v1882
      %1943 = vmatprep.subr.mxu0 0.0
      %1944 = vmatpush1.msra.mxu0 %v1883
      %1945 = vmatprep.subr.mxu0 0.0
      %1946 = vmatpush1.msra.mxu0 %v1884
      %1947 = vmatprep.subr.mxu0 0.0
      %1948 = vmatpush1.msra.mxu0 0.0
      %1949 = vmatprep.subr.mxu0 0.0
      %1950 = vmatpush1.msra.mxu0 0.0
      %1951 = vmatprep.subr.mxu0 0.0
      %1952 = vmatpush1.msra.mxu0 0.0
      %1953 = vmatprep.subr.mxu0 0.0
      %1954 = vmatpush1.msra.mxu0 0.0
      %1955 = vmatprep.subr.mxu0 0.0
      %1956 = vmatpush1.msra.mxu0 0.0
      %1957 = vmatprep.subr.mxu0 0.0
      %1958 = vmatpush1.msra.mxu0 0.0
      %1959 = vmatprep.subr.mxu0 0.0
      %1960 = vmatpush1.msra.mxu0 0.0
      %1961 = vmatprep.subr.mxu0 0.0
      %1962 = vmatpush1.msra.mxu0 0.0
      %1963 = vmatprep.subr.mxu0 0.0
      %1964 = vmatpush1.msra.mxu0 0.0
      %1965 = vmatprep.subr.mxu0 0.0
      %1966 = vmatpush1.msra.mxu0 0.0
      %1967 = vmatprep.subr.mxu0 0.0
      %1968 = vmatpush1.msra.mxu0 0.0
      %1969 = vmatprep.subr.mxu0 0.0
      %1970 = vmatpush1.msra.mxu0 0.0
      %1971 = vmatprep.subr.mxu0 0.0
      %1972 = vmatpush1.msra.mxu0 0.0
      %1973 = vmatprep.subr.mxu0 0.0
      %1974 = vmatpush1.msra.mxu0 0.0
      %1975 = vmatprep.subr.mxu0 0.0
      %1976 = vmatpush1.msra.mxu0 0.0
      %1977 = vmatprep.subr.mxu0 0.0
      %1978 = vmatpush1.msra.mxu0 0.0
      %1979 = vmatprep.subr.mxu0 0.0
      %1980 = vmatpush1.msra.mxu0 0.0
      %1981 = vmatprep.subr.mxu0 0.0
      %1982 = vmatpush1.msra.mxu0 0.0
      %1983 = vmatprep.subr.mxu0 0.0
      %1984 = vmatpush1.msra.mxu0 0.0
      %1985 = vmatprep.subr.mxu0 0.0
      %1986 = vmatpush1.msra.mxu0 0.0
      %1987 = vmatprep.subr.mxu0 0.0
      %1988 = vmatpush1.msra.mxu0 0.0
      %1989 = vmatprep.subr.mxu0 0.0
      %1990 = vmatpush1.msra.mxu0 0.0
      %1991 = vmatprep.subr.mxu0 0.0
      %1992 = vmatpush1.msra.mxu0 0.0
      %1993 = vmatprep.subr.mxu0 0.0
      %1994 = vmatpush1.msra.mxu0 0.0
      %1995 = vmatprep.subr.mxu0 0.0
      %1996 = vmatpush1.msra.mxu0 0.0
      %1997 = vmatprep.mubr.f32.mxu0 0.0
      %1998 = vmatmul.mubr.f32.gmra.mrb[0].mxu0 %v1886
      %v1999 = vpop.f32.mrb[0].mxu0
      %v2000 = vadd.f32 0.0, %v1999
      %v2001 = vpop.f32.mrb[0].mxu0
      %2002 = vmatprep.mubr.f32.mxu0 0.0
      %2003 = vmatmul.mubr.f32.gmra.mrb[0].mxu0 %v1889
      %v2004 = vpop.f32.mrb[0].mxu0
      %v2005 = vadd.f32 0.0, %v2004
      %v2006 = vpop.f32.mrb[0].mxu0
      %2007 = vmatprep.mubr.f32.mxu0 0.0
      %2008 = vmatmul.mubr.f32.gmra.mrb[0].mxu0 %v1892
      %v2009 = vpop.f32.mrb[0].mxu0
      %v2010 = vadd.f32 0.0, %v2009
      %v2011 = vpop.f32.mrb[0].mxu0
      %2012 = vmatprep.mubr.f32.mxu0 0.0
      %2013 = vmatmul.mubr.f32.gmra.mrb[0].mxu0 %v1895
      %v2014 = vpop.f32.mrb[0].mxu0
      %v2015 = vadd.f32 0.0, %v2014
      %v2016 = vpop.f32.mrb[0].mxu0
      %2017 = vmatprep.mubr.f32.mxu0 0.0
      %2018 = vmatmul.mubr.f32.gmra.mrb[0].mxu0 %v1898
      %v2019 = vpop.f32.mrb[0].mxu0
      %v2020 = vadd.f32 0.0, %v2019
      %v2021 = vpop.f32.mrb[0].mxu0
      %2022 = vmatprep.mubr.f32.mxu0 0.0
      %2023 = vmatmul.mubr.f32.gmra.mrb[0].mxu0 %v1901
      %v2024 = vpop.f32.mrb[0].mxu0
      %v2025 = vadd.f32 0.0, %v2024
      %v2026 = vpop.f32.mrb[0].mxu0
      %2027 = vmatprep.mubr.f32.mxu0 0.0
      %2028 = vmatmul.mubr.f32.gmra.mrb[0].mxu0 %v1904
      %v2029 = vpop.f32.mrb[0].mxu0
      %v2030 = vadd.f32 0.0, %v2029
      %v2031 = vpop.f32.mrb[0].mxu0
      %2032 = vmatprep.mubr.f32.mxu0 0.0
      %2033 = vmatmul.mubr.f32.gmra.mrb[0].mxu0 %v1907
      %v2034 = vpop.f32.mrb[0].mxu0
      %v2035 = vadd.f32 0.0, %v2034
      %v2036 = vpop.f32.mrb[0].mxu0
      %2037 = vmatprep.mubr.f32.mxu0 0.0
      %2038 = vmatmul.mubr.f32.gmra.mrb[0].mxu0 %v1910
      %v2039 = vpop.f32.mrb[0].mxu0
      %v2040 = vadd.f32 0.0, %v2039
      %v2041 = vpop.f32.mrb[0].mxu0
      %2042 = vmatprep.mubr.f32.mxu0 0.0
      %2043 = vmatmul.mubr.f32.gmra.mrb[0].mxu0 %v1913
      %v2044 = vpop.f32.mrb[0].mxu0
      %v2045 = vadd.f32 0.0, %v2044
      %v2046 = vpop.f32.mrb[0].mxu0
      %2047 = vmatprep.mubr.f32.mxu0 0.0
      %2048 = vmatmul.mubr.f32.gmra.mrb[0].mxu0 %v1916
      %v2049 = vpop.f32.mrb[0].mxu0
      %v2050 = vadd.f32 0.0, %v2049
      %v2051 = vpop.f32.mrb[0].mxu0
      %2052 = vmatprep.mubr.f32.mxu0 0.0
      %2053 = vmatmul.mubr.f32.gmra.mrb[0].mxu0 %v1919
      %v2054 = vpop.f32.mrb[0].mxu0
      %v2055 = vadd.f32 0.0, %v2054
      %v2056 = vpop.f32.mrb[0].mxu0
      %2057 = vmatprep.mubr.f32.mxu0 0.0
      %2058 = vmatmul.mubr.f32.gmra.mrb[0].mxu0 %v1922
      %v2059 = vpop.f32.mrb[0].mxu0
      %v2060 = vadd.f32 0.0, %v2059
      %v2061 = vpop.f32.mrb[0].mxu0
      %2062 = vmatprep.mubr.f32.mxu0 0.0
      %2063 = vmatmul.mubr.f32.gmra.mrb[0].mxu0 %v1925
      %v2064 = vpop.f32.mrb[0].mxu0
      %v2065 = vadd.f32 0.0, %v2064
      %v2066 = vpop.f32.mrb[0].mxu0
      %2067 = vmatprep.mubr.f32.mxu0 0.0
      %2068 = vmatmul.mubr.f32.gmra.mrb[0].mxu0 %v1928
      %v2069 = vpop.f32.mrb[0].mxu0
      %v2070 = vadd.f32 0.0, %v2069
      %v2071 = vpop.f32.mrb[0].mxu0
      %2072 = vmatprep.mubr.f32.mxu0 0.0
      %2073 = vmatmul.mubr.f32.gmra.mrb[0].mxu0 %v1931
      %v2074 = vpop.f32.mrb[0].mxu0
      %v2075 = vadd.f32 0.0, %v2074
      %v2076 = vpop.f32.mrb[0].mxu0
      %2077 = vdwg.mxu0
      %v2078 = vadd.f32 %v1765, %v2000
      %v2079 = vadd.f32 %v1766, %v2005
      %v2080 = vadd.f32 %v1767, %v2010
      %v2081 = vadd.f32 %v1768, %v2015
      %v2082 = vadd.f32 %v1769, %v2020
      %v2083 = vadd.f32 %v1770, %v2025
      %v2084 = vadd.f32 %v1771, %v2030
      %v2085 = vadd.f32 %v1772, %v2035
      %v2086 = vadd.f32 %v1773, %v2040
      %v2087 = vadd.f32 %v1774, %v2045
      %v2088 = vadd.f32 %v1775, %v2050
      %v2089 = vadd.f32 %v1776, %v2055
      %v2090 = vadd.f32 %v1777, %v2060
      %v2091 = vadd.f32 %v1778, %v2065
      %v2092 = vadd.f32 %v1779, %v2070
      %v2093 = vadd.f32 %v1780, %v2075
      %v2094 = vlaneseq
      %v2095 = vshrl.u32 %v2094, 7
      %v2096 = vsub.s32 0, %v2095
      %v2097 = vrot.slane %v229, %v2096
      %v2098 = vadd.f32 %v2078, %v2097
      %v2099 = vadd.f32 %v2079, %v2097
      %v2100 = vadd.f32 %v2080, %v2097
      %v2101 = vadd.f32 %v2081, %v2097
      %v2102 = vadd.f32 %v2082, %v2097
      %v2103 = vadd.f32 %v2083, %v2097
      %v2104 = vadd.f32 %v2084, %v2097
      %v2105 = vadd.f32 %v2085, %v2097
      %v2106 = vadd.f32 %v2086, %v2097
      %v2107 = vadd.f32 %v2087, %v2097
      %v2108 = vadd.f32 %v2088, %v2097
      %v2109 = vadd.f32 %v2089, %v2097
      %v2110 = vadd.f32 %v2090, %v2097
      %v2111 = vadd.f32 %v2091, %v2097
      %v2112 = vadd.f32 %v2092, %v2097
      %v2113 = vadd.f32 %v2093, %v2097
      %v2114 = vmax.f32 %v2098, 0.0
      %v2115 = vmax.f32 %v2099, 0.0
      %v2116 = vmax.f32 %v2100, 0.0
      %v2117 = vmax.f32 %v2101, 0.0
      %v2118 = vmax.f32 %v2102, 0.0
      %v2119 = vmax.f32 %v2103, 0.0
      %v2120 = vmax.f32 %v2104, 0.0
      %v2121 = vmax.f32 %v2105, 0.0
      %v2122 = vmax.f32 %v2106, 0.0
      %v2123 = vmax.f32 %v2107, 0.0
      %v2124 = vmax.f32 %v2108, 0.0
      %v2125 = vmax.f32 %v2109, 0.0
      %v2126 = vmax.f32 %v2110, 0.0
      %v2127 = vmax.f32 %v2111, 0.0
      %v2128 = vmax.f32 %v2112, 0.0
      %v2129 = vmax.f32 %v2113, 0.0
      %v2130 = vpack.c.bf16 %v2115, %v2114
      %v2131 = vpack.c.bf16 %v2117, %v2116
      %v2132 = vpack.c.bf16 %v2119, %v2118
      %v2133 = vpack.c.bf16 %v2121, %v2120
      %v2134 = vpack.c.bf16 %v2123, %v2122
      %v2135 = vpack.c.bf16 %v2125, %v2124
      %v2136 = vpack.c.bf16 %v2127, %v2126
      %v2137 = vpack.c.bf16 %v2129, %v2128
      %v2138 = vld [vmem:[%s2] sm:$0xf]
      %v2139 = vld [vmem:[%s2 + $0x4] sm:$0xf]
      %v2140 = vld [vmem:[%s2 + $0x8] sm:$0xf]
      %v2141 = vld [vmem:[%s2 + $0xc] sm:$0xf]
      %v2142 = vld [vmem:[%s2 + $0x10] sm:$0xf]
      %v2143 = vld [vmem:[%s2 + $0x14] sm:$0xf]
      %v2144 = vld [vmem:[%s2 + $0x18] sm:$0xf]
      %v2145 = vld [vmem:[%s2 + $0x1c] sm:$0xf]
      %v2146 = vld [vmem:[%s2 + $0x20] sm:$0xf]
      %v2147 = vld [vmem:[%s2 + $0x24] sm:$0xf]
      %v2148 = vld [vmem:[%s2 + $0x28] sm:$0xf]
      %v2149 = vld [vmem:[%s2 + $0x2c] sm:$0xf]
      %v2150 = vld [vmem:[%s2 + $0x30] sm:$0xf]
      %v2151 = vld [vmem:[%s2 + $0x34] sm:$0xf]
      %v2152 = vld [vmem:[%s2 + $0x38] sm:$0xf]
      %v2153 = vld [vmem:[%s2 + $0x3c] sm:$0xf]
      %v2154 = vlaneseq
      %v2155 = vshrl.u32 %v2154, 7
      %v2156 = vsub.s32 1, %v2155
      %v2157 = vrot.slane %v229, %v2156
      %v2174 = vunpack.c.l.b16 %v2138
      %v2175 = vunpack.c.l.b16 %v2139
      %v2176 = vunpack.c.l.b16 %v2140
      %v2177 = vunpack.c.l.b16 %v2141
      %v2178 = vunpack.c.l.b16 %v2142
      %v2179 = vunpack.c.l.b16 %v2143
      %v2180 = vunpack.c.l.b16 %v2144
      %v2181 = vunpack.c.l.b16 %v2145
      %v2182 = vunpack.c.l.b16 %v2146
      %v2183 = vunpack.c.l.b16 %v2147
      %v2184 = vunpack.c.l.b16 %v2148
      %v2185 = vunpack.c.l.b16 %v2149
      %v2186 = vunpack.c.l.b16 %v2150
      %v2187 = vunpack.c.l.b16 %v2151
      %v2188 = vunpack.c.l.b16 %v2152
      %v2189 = vunpack.c.l.b16 %v2153
      %v2190 = vpack.c.b16 %v2175, %v2174
      %v2191 = vpack.c.b16 %v2177, %v2176
      %v2192 = vpack.c.b16 %v2179, %v2178
      %v2193 = vpack.c.b16 %v2181, %v2180
      %v2194 = vpack.c.b16 %v2183, %v2182
      %v2195 = vpack.c.b16 %v2185, %v2184
      %v2196 = vpack.c.b16 %v2187, %v2186
      %v2197 = vpack.c.b16 %v2189, %v2188
      %2206 = vmatprep.subr.bf16.mxu0 0
      %2207 = vmatpush1.bf16.msra.mxu0 %v2190
      %2208 = vmatprep.subr.bf16.mxu0 0
      %2209 = vmatpush1.bf16.msra.mxu0 %v2191
      %2210 = vmatprep.subr.bf16.mxu0 0
      %2211 = vmatpush1.bf16.msra.mxu0 %v2192
      %2212 = vmatprep.subr.bf16.mxu0 0
      %2213 = vmatpush1.bf16.msra.mxu0 %v2193
      %2214 = vmatprep.subr.bf16.mxu0 0
      %2215 = vmatpush1.bf16.msra.mxu0 %v2194
      %2216 = vmatprep.subr.bf16.mxu0 0
      %2217 = vmatpush1.bf16.msra.mxu0 %v2195
      %2218 = vmatprep.subr.bf16.mxu0 0
      %2219 = vmatpush1.bf16.msra.mxu0 %v2196
      %2220 = vmatprep.subr.bf16.mxu0 0
      %2221 = vmatpush1.bf16.msra.mxu0 %v2197
      %2222 = vmatprep.subr.bf16.mxu0 0
      %2223 = vmatpush1.bf16.msra.mxu0 0
      %2224 = vmatprep.subr.bf16.mxu0 0
      %2225 = vmatpush1.bf16.msra.mxu0 0
      %2226 = vmatprep.subr.bf16.mxu0 0
      %2227 = vmatpush1.bf16.msra.mxu0 0
      %2228 = vmatprep.subr.bf16.mxu0 0
      %2229 = vmatpush1.bf16.msra.mxu0 0
      %2230 = vmatprep.subr.bf16.mxu0 0
      %2231 = vmatpush1.bf16.msra.mxu0 0
      %2232 = vmatprep.subr.bf16.mxu0 0
      %2233 = vmatpush1.bf16.msra.mxu0 0
      %2234 = vmatprep.subr.bf16.mxu0 0
      %2235 = vmatpush1.bf16.msra.mxu0 0
      %2236 = vmatprep.subr.bf16.mxu0 0
      %2237 = vmatpush1.bf16.msra.mxu0 0
      %2238 = vmatprep.mubr.bf16.mxu0 0
      %2239 = vmatmul.mubr.bf16.gmra.mrb[0].mxu0 %v2130
      %v2240 = vpop.f32.mrb[0].mxu0
      %v2241 = vadd.f32 %v2157, %v2240
      %v2242 = vpop.f32.mrb[0].mxu0
      %v2243 = vpop.f32.mrb[0].mxu0
      %v2244 = vadd.f32 %v2157, %v2243
      %v2245 = vpop.f32.mrb[0].mxu0
      %2246 = vmatprep.mubr.bf16.mxu0 0
      %2247 = vmatmul.mubr.bf16.gmra.mrb[0].mxu0 %v2131
      %v2248 = vpop.f32.mrb[0].mxu0
      %v2249 = vadd.f32 %v2157, %v2248
      %v2250 = vpop.f32.mrb[0].mxu0
      %v2251 = vpop.f32.mrb[0].mxu0
      %v2252 = vadd.f32 %v2157, %v2251
      %v2253 = vpop.f32.mrb[0].mxu0
      %2254 = vmatprep.mubr.bf16.mxu0 0
      %2255 = vmatmul.mubr.bf16.gmra.mrb[0].mxu0 %v2132
      %v2256 = vpop.f32.mrb[0].mxu0
      %v2257 = vadd.f32 %v2157, %v2256
      %v2258 = vpop.f32.mrb[0].mxu0
      %v2259 = vpop.f32.mrb[0].mxu0
      %v2260 = vadd.f32 %v2157, %v2259
      %v2261 = vpop.f32.mrb[0].mxu0
      %2262 = vmatprep.mubr.bf16.mxu0 0
      %2263 = vmatmul.mubr.bf16.gmra.mrb[0].mxu0 %v2133
      %v2264 = vpop.f32.mrb[0].mxu0
      %v2265 = vadd.f32 %v2157, %v2264
      %v2266 = vpop.f32.mrb[0].mxu0
      %v2267 = vpop.f32.mrb[0].mxu0
      %v2268 = vadd.f32 %v2157, %v2267
      %v2269 = vpop.f32.mrb[0].mxu0
      %2270 = vmatprep.mubr.bf16.mxu0 0
      %2271 = vmatmul.mubr.bf16.gmra.mrb[0].mxu0 %v2134
      %v2272 = vpop.f32.mrb[0].mxu0
      %v2273 = vadd.f32 %v2157, %v2272
      %v2274 = vpop.f32.mrb[0].mxu0
      %v2275 = vpop.f32.mrb[0].mxu0
      %v2276 = vadd.f32 %v2157, %v2275
      %v2277 = vpop.f32.mrb[0].mxu0
      %2278 = vmatprep.mubr.bf16.mxu0 0
      %2279 = vmatmul.mubr.bf16.gmra.mrb[0].mxu0 %v2135
      %v2280 = vpop.f32.mrb[0].mxu0
      %v2281 = vadd.f32 %v2157, %v2280
      %v2282 = vpop.f32.mrb[0].mxu0
      %v2283 = vpop.f32.mrb[0].mxu0
      %v2284 = vadd.f32 %v2157, %v2283
      %v2285 = vpop.f32.mrb[0].mxu0
      %2286 = vmatprep.mubr.bf16.mxu0 0
      %2287 = vmatmul.mubr.bf16.gmra.mrb[0].mxu0 %v2136
      %v2288 = vpop.f32.mrb[0].mxu0
      %v2289 = vadd.f32 %v2157, %v2288
      %v2290 = vpop.f32.mrb[0].mxu0
      %v2291 = vpop.f32.mrb[0].mxu0
      %v2292 = vadd.f32 %v2157, %v2291
      %v2293 = vpop.f32.mrb[0].mxu0
      %2294 = vmatprep.mubr.bf16.mxu0 0
      %2295 = vmatmul.mubr.bf16.gmra.mrb[0].mxu0 %v2137
      %v2296 = vpop.f32.mrb[0].mxu0
      %v2297 = vadd.f32 %v2157, %v2296
      %v2298 = vpop.f32.mrb[0].mxu0
      %v2299 = vpop.f32.mrb[0].mxu0
      %v2300 = vadd.f32 %v2157, %v2299
      %v2301 = vpop.f32.mrb[0].mxu0
      %2302 = vdwg.mxu0
      %v2303 = vmax.f32 %v2241, 0.0
      %v2304 = vmax.f32 %v2244, 0.0
      %v2305 = vmax.f32 %v2249, 0.0
      %v2306 = vmax.f32 %v2252, 0.0
      %v2307 = vmax.f32 %v2257, 0.0
      %v2308 = vmax.f32 %v2260, 0.0
      %v2309 = vmax.f32 %v2265, 0.0
      %v2310 = vmax.f32 %v2268, 0.0
      %v2311 = vmax.f32 %v2273, 0.0
      %v2312 = vmax.f32 %v2276, 0.0
      %v2313 = vmax.f32 %v2281, 0.0
      %v2314 = vmax.f32 %v2284, 0.0
      %v2315 = vmax.f32 %v2289, 0.0
      %v2316 = vmax.f32 %v2292, 0.0
      %v2317 = vmax.f32 %v2297, 0.0
      %v2318 = vmax.f32 %v2300, 0.0
      %v2319 = vpack.c.bf16 %v2304, %v2303
      %v2320 = vpack.c.bf16 %v2306, %v2305
      %v2321 = vpack.c.bf16 %v2308, %v2307
      %v2322 = vpack.c.bf16 %v2310, %v2309
      %v2323 = vpack.c.bf16 %v2312, %v2311
      %v2324 = vpack.c.bf16 %v2314, %v2313
      %v2325 = vpack.c.bf16 %v2316, %v2315
      %v2326 = vpack.c.bf16 %v2318, %v2317
      %v2327 = vld [vmem:[%s3] sm:$0xf]
      %v2328 = vld [vmem:[%s3 + $0x4] sm:$0xf]
      %v2329 = vld [vmem:[%s3 + $0x8] sm:$0xf]
      %v2330 = vld [vmem:[%s3 + $0xc] sm:$0xf]
      %v2331 = vld [vmem:[%s3 + $0x10] sm:$0xf]
      %v2332 = vld [vmem:[%s3 + $0x14] sm:$0xf]
      %v2333 = vld [vmem:[%s3 + $0x18] sm:$0xf]
      %v2334 = vld [vmem:[%s3 + $0x1c] sm:$0xf]
      %v2335 = vlaneseq
      %v2336 = vshrl.u32 %v2335, 7
      %v2337 = vsub.s32 2, %v2336
      %v2338 = vrot.slane %v229, %v2337
      %v2347 = vunpack.c.l.b16 %v2327
      %v2348 = vunpack.c.l.b16 %v2328
      %v2349 = vunpack.c.l.b16 %v2329
      %v2350 = vunpack.c.l.b16 %v2330
      %v2351 = vunpack.c.l.b16 %v2331
      %v2352 = vunpack.c.l.b16 %v2332
      %v2353 = vunpack.c.l.b16 %v2333
      %v2354 = vunpack.c.l.b16 %v2334
      %v2355 = vpack.c.b16 %v2348, %v2347
      %v2356 = vpack.c.b16 %v2350, %v2349
      %v2357 = vpack.c.b16 %v2352, %v2351
      %v2358 = vpack.c.b16 %v2354, %v2353
      %vm2363 = vcmask 523264
      %v2365 = vsel %vm2363, %v2319, 0
      %v2368 = vsel %vm2363, %v2320, 0
      %v2371 = vsel %vm2363, %v2321, 0
      %v2374 = vsel %vm2363, %v2322, 0
      %v2377 = vsel %vm2363, %v2323, 0
      %v2380 = vsel %vm2363, %v2324, 0
      %v2383 = vsel %vm2363, %v2325, 0
      %v2386 = vsel %vm2363, %v2326, 0
      %2388 = vmatprep.subr.bf16.mxu0 0
      %2389 = vmatpush1.bf16.msra.mxu0 %v2355
      %2390 = vmatprep.subr.bf16.mxu0 0
      %2391 = vmatpush1.bf16.msra.mxu0 %v2356
      %2392 = vmatprep.subr.bf16.mxu0 0
      %2393 = vmatpush1.bf16.msra.mxu0 %v2357
      %2394 = vmatprep.subr.bf16.mxu0 0
      %2395 = vmatpush1.bf16.msra.mxu0 %v2358
      %2396 = vmatprep.subr.bf16.mxu0 0
      %2397 = vmatpush1.bf16.msra.mxu0 0
      %2398 = vmatprep.subr.bf16.mxu0 0
      %2399 = vmatpush1.bf16.msra.mxu0 0
      %2400 = vmatprep.subr.bf16.mxu0 0
      %2401 = vmatpush1.bf16.msra.mxu0 0
      %2402 = vmatprep.subr.bf16.mxu0 0
      %2403 = vmatpush1.bf16.msra.mxu0 0
      %2404 = vmatprep.subr.bf16.mxu0 0
      %2405 = vmatpush1.bf16.msra.mxu0 0
      %2406 = vmatprep.subr.bf16.mxu0 0
      %2407 = vmatpush1.bf16.msra.mxu0 0
      %2408 = vmatprep.subr.bf16.mxu0 0
      %2409 = vmatpush1.bf16.msra.mxu0 0
      %2410 = vmatprep.subr.bf16.mxu0 0
      %2411 = vmatpush1.bf16.msra.mxu0 0
      %2412 = vmatprep.subr.bf16.mxu0 0
      %2413 = vmatpush1.bf16.msra.mxu0 0
      %2414 = vmatprep.subr.bf16.mxu0 0
      %2415 = vmatpush1.bf16.msra.mxu0 0
      %2416 = vmatprep.subr.bf16.mxu0 0
      %2417 = vmatpush1.bf16.msra.mxu0 0
      %2418 = vmatprep.subr.bf16.mxu0 0
      %2419 = vmatpush1.bf16.msra.mxu0 0
      %2420 = vmatprep.mubr.bf16.mxu0 0
      %2421 = vmatmul.mubr.bf16.gmra.mrb[0].mxu0 %v2365
      %v2422 = vpop.f32.mrb[0].mxu0
      %v2423 = vadd.f32 %v2338, %v2422
      %v2424 = vpop.f32.mrb[0].mxu0
      %v2425 = vpop.f32.mrb[0].mxu0
      %v2426 = vadd.f32 %v2338, %v2425
      %v2427 = vpop.f32.mrb[0].mxu0
      %2428 = vmatprep.mubr.bf16.mxu0 0
      %2429 = vmatmul.mubr.bf16.gmra.mrb[0].mxu0 %v2368
      %v2430 = vpop.f32.mrb[0].mxu0
      %v2431 = vadd.f32 %v2338, %v2430
      %v2432 = vpop.f32.mrb[0].mxu0
      %v2433 = vpop.f32.mrb[0].mxu0
      %v2434 = vadd.f32 %v2338, %v2433
      %v2435 = vpop.f32.mrb[0].mxu0
      %2436 = vmatprep.mubr.bf16.mxu0 0
      %2437 = vmatmul.mubr.bf16.gmra.mrb[0].mxu0 %v2371
      %v2438 = vpop.f32.mrb[0].mxu0
      %v2439 = vadd.f32 %v2338, %v2438
      %v2440 = vpop.f32.mrb[0].mxu0
      %v2441 = vpop.f32.mrb[0].mxu0
      %v2442 = vadd.f32 %v2338, %v2441
      %v2443 = vpop.f32.mrb[0].mxu0
      %2444 = vmatprep.mubr.bf16.mxu0 0
      %2445 = vmatmul.mubr.bf16.gmra.mrb[0].mxu0 %v2374
      %v2446 = vpop.f32.mrb[0].mxu0
      %v2447 = vadd.f32 %v2338, %v2446
      %v2448 = vpop.f32.mrb[0].mxu0
      %v2449 = vpop.f32.mrb[0].mxu0
      %v2450 = vadd.f32 %v2338, %v2449
      %v2451 = vpop.f32.mrb[0].mxu0
      %2452 = vmatprep.mubr.bf16.mxu0 0
      %2453 = vmatmul.mubr.bf16.gmra.mrb[0].mxu0 %v2377
      %v2454 = vpop.f32.mrb[0].mxu0
      %v2455 = vadd.f32 %v2338, %v2454
      %v2456 = vpop.f32.mrb[0].mxu0
      %v2457 = vpop.f32.mrb[0].mxu0
      %v2458 = vadd.f32 %v2338, %v2457
      %v2459 = vpop.f32.mrb[0].mxu0
      %2460 = vmatprep.mubr.bf16.mxu0 0
      %2461 = vmatmul.mubr.bf16.gmra.mrb[0].mxu0 %v2380
      %v2462 = vpop.f32.mrb[0].mxu0
      %v2463 = vadd.f32 %v2338, %v2462
      %v2464 = vpop.f32.mrb[0].mxu0
      %v2465 = vpop.f32.mrb[0].mxu0
      %v2466 = vadd.f32 %v2338, %v2465
      %v2467 = vpop.f32.mrb[0].mxu0
      %2468 = vmatprep.mubr.bf16.mxu0 0
      %2469 = vmatmul.mubr.bf16.gmra.mrb[0].mxu0 %v2383
      %v2470 = vpop.f32.mrb[0].mxu0
      %v2471 = vadd.f32 %v2338, %v2470
      %v2472 = vpop.f32.mrb[0].mxu0
      %v2473 = vpop.f32.mrb[0].mxu0
      %v2474 = vadd.f32 %v2338, %v2473
      %v2475 = vpop.f32.mrb[0].mxu0
      %2476 = vmatprep.mubr.bf16.mxu0 0
      %2477 = vmatmul.mubr.bf16.gmra.mrb[0].mxu0 %v2386
      %v2478 = vpop.f32.mrb[0].mxu0
      %v2479 = vadd.f32 %v2338, %v2478
      %v2480 = vpop.f32.mrb[0].mxu0
      %v2481 = vpop.f32.mrb[0].mxu0
      %v2482 = vadd.f32 %v2338, %v2481
      %v2483 = vpop.f32.mrb[0].mxu0
      %2484 = vdwg.mxu0
      %2485 = vmax.xlane.f32.xlu0 %v2423
      %v2486 = vpop.xlane.xlu0 %2485
      %2487 = vmax.xlane.f32.xlu0 %v2426
      %v2488 = vpop.xlane.xlu0 %2487
      %2489 = vmax.xlane.f32.xlu0 %v2431
      %v2490 = vpop.xlane.xlu0 %2489
      %2491 = vmax.xlane.f32.xlu0 %v2434
      %v2492 = vpop.xlane.xlu0 %2491
      %2493 = vmax.xlane.f32.xlu0 %v2439
      %v2494 = vpop.xlane.xlu0 %2493
      %2495 = vmax.xlane.f32.xlu0 %v2442
      %v2496 = vpop.xlane.xlu0 %2495
      %2497 = vmax.xlane.f32.xlu0 %v2447
      %v2498 = vpop.xlane.xlu0 %2497
      %2499 = vmax.xlane.f32.xlu0 %v2450
      %v2500 = vpop.xlane.xlu0 %2499
      %2501 = vmax.xlane.f32.xlu0 %v2455
      %v2502 = vpop.xlane.xlu0 %2501
      %2503 = vmax.xlane.f32.xlu0 %v2458
      %v2504 = vpop.xlane.xlu0 %2503
      %2505 = vmax.xlane.f32.xlu0 %v2463
      %v2506 = vpop.xlane.xlu0 %2505
      %2507 = vmax.xlane.f32.xlu0 %v2466
      %v2508 = vpop.xlane.xlu0 %2507
      %2509 = vmax.xlane.f32.xlu0 %v2471
      %v2510 = vpop.xlane.xlu0 %2509
      %2511 = vmax.xlane.f32.xlu0 %v2474
      %v2512 = vpop.xlane.xlu0 %2511
      %2513 = vmax.xlane.f32.xlu0 %v2479
      %v2514 = vpop.xlane.xlu0 %2513
      %2515 = vmax.xlane.f32.xlu0 %v2482
      %v2516 = vpop.xlane.xlu0 %2515
      %v2517 = vsub.f32 %v2423, %v2486
      %v2518 = vsub.f32 %v2426, %v2488
      %v2519 = vsub.f32 %v2431, %v2490
      %v2520 = vsub.f32 %v2434, %v2492
      %v2521 = vsub.f32 %v2439, %v2494
      %v2522 = vsub.f32 %v2442, %v2496
      %v2523 = vsub.f32 %v2447, %v2498
      %v2524 = vsub.f32 %v2450, %v2500
      %v2525 = vsub.f32 %v2455, %v2502
      %v2526 = vsub.f32 %v2458, %v2504
      %v2527 = vsub.f32 %v2463, %v2506
      %v2528 = vsub.f32 %v2466, %v2508
      %v2529 = vsub.f32 %v2471, %v2510
      %v2530 = vsub.f32 %v2474, %v2512
      %v2531 = vsub.f32 %v2479, %v2514
      %v2532 = vsub.f32 %v2482, %v2516
      %v2533 = vmul.f32 %v2517, 1.442695
      %v2534 = vpow.pop %v2533
      %v2535 = vmul.f32 %v2518, 1.442695
      %v2536 = vpow.pop %v2535
      %v2537 = vmul.f32 %v2519, 1.442695
      %v2538 = vpow.pop %v2537
      %v2539 = vmul.f32 %v2520, 1.442695
      %v2540 = vpow.pop %v2539
      %v2541 = vmul.f32 %v2521, 1.442695
      %v2542 = vpow.pop %v2541
      %v2543 = vmul.f32 %v2522, 1.442695
      %v2544 = vpow.pop %v2543
      %v2545 = vmul.f32 %v2523, 1.442695
      %v2546 = vpow.pop %v2545
      %v2547 = vmul.f32 %v2524, 1.442695
      %v2548 = vpow.pop %v2547
      %v2549 = vmul.f32 %v2525, 1.442695
      %v2550 = vpow.pop %v2549
      %v2551 = vmul.f32 %v2526, 1.442695
      %v2552 = vpow.pop %v2551
      %v2553 = vmul.f32 %v2527, 1.442695
      %v2554 = vpow.pop %v2553
      %v2555 = vmul.f32 %v2528, 1.442695
      %v2556 = vpow.pop %v2555
      %v2557 = vmul.f32 %v2529, 1.442695
      %v2558 = vpow.pop %v2557
      %v2559 = vmul.f32 %v2530, 1.442695
      %v2560 = vpow.pop %v2559
      %v2561 = vmul.f32 %v2531, 1.442695
      %v2562 = vpow.pop %v2561
      %v2563 = vmul.f32 %v2532, 1.442695
      %v2564 = vpow.pop %v2563
      %2565 = vadd.xlane.f32.xlu0 %v2534
      %v2566 = vpop.xlane.xlu0 %2565
      %2567 = vadd.xlane.f32.xlu0 %v2536
      %v2568 = vpop.xlane.xlu0 %2567
      %2569 = vadd.xlane.f32.xlu0 %v2538
      %v2570 = vpop.xlane.xlu0 %2569
      %2571 = vadd.xlane.f32.xlu0 %v2540
      %v2572 = vpop.xlane.xlu0 %2571
      %2573 = vadd.xlane.f32.xlu0 %v2542
      %v2574 = vpop.xlane.xlu0 %2573
      %2575 = vadd.xlane.f32.xlu0 %v2544
      %v2576 = vpop.xlane.xlu0 %2575
      %2577 = vadd.xlane.f32.xlu0 %v2546
      %v2578 = vpop.xlane.xlu0 %2577
      %2579 = vadd.xlane.f32.xlu0 %v2548
      %v2580 = vpop.xlane.xlu0 %2579
      %2581 = vadd.xlane.f32.xlu0 %v2550
      %v2582 = vpop.xlane.xlu0 %2581
      %2583 = vadd.xlane.f32.xlu0 %v2552
      %v2584 = vpop.xlane.xlu0 %2583
      %2585 = vadd.xlane.f32.xlu0 %v2554
      %v2586 = vpop.xlane.xlu0 %2585
      %2587 = vadd.xlane.f32.xlu0 %v2556
      %v2588 = vpop.xlane.xlu0 %2587
      %2589 = vadd.xlane.f32.xlu0 %v2558
      %v2590 = vpop.xlane.xlu0 %2589
      %2591 = vadd.xlane.f32.xlu0 %v2560
      %v2592 = vpop.xlane.xlu0 %2591
      %2593 = vadd.xlane.f32.xlu0 %v2562
      %v2594 = vpop.xlane.xlu0 %2593
      %2595 = vadd.xlane.f32.xlu0 %v2564
      %v2596 = vpop.xlane.xlu0 %2595
      %v2597 = vrcp.pop %v2566
      %v2598 = vrcp.pop %v2568
      %v2599 = vrcp.pop %v2570
      %v2600 = vrcp.pop %v2572
      %v2601 = vrcp.pop %v2574
      %v2602 = vrcp.pop %v2576
      %v2603 = vrcp.pop %v2578
      %v2604 = vrcp.pop %v2580
      %v2605 = vrcp.pop %v2582
      %v2606 = vrcp.pop %v2584
      %v2607 = vrcp.pop %v2586
      %v2608 = vrcp.pop %v2588
      %v2609 = vrcp.pop %v2590
      %v2610 = vrcp.pop %v2592
      %v2611 = vrcp.pop %v2594
      %v2612 = vrcp.pop %v2596
      %v2613 = vmul.f32 %v2534, %v2597
      %v2614 = vmul.f32 %v2536, %v2598
      %v2615 = vmul.f32 %v2538, %v2599
      %v2616 = vmul.f32 %v2540, %v2600
      %v2617 = vmul.f32 %v2542, %v2601
      %v2618 = vmul.f32 %v2544, %v2602
      %v2619 = vmul.f32 %v2546, %v2603
      %v2620 = vmul.f32 %v2548, %v2604
      %v2621 = vmul.f32 %v2550, %v2605
      %v2622 = vmul.f32 %v2552, %v2606
      %v2623 = vmul.f32 %v2554, %v2607
      %v2624 = vmul.f32 %v2556, %v2608
      %v2625 = vmul.f32 %v2558, %v2609
      %v2626 = vmul.f32 %v2560, %v2610
      %v2627 = vmul.f32 %v2562, %v2611
      %v2628 = vmul.f32 %v2564, %v2612
      %v2629 = vpack.c.bf16 %v2614, %v2613
      %v2630 = vpack.c.bf16 %v2616, %v2615
      %v2631 = vpack.c.bf16 %v2618, %v2617
      %v2632 = vpack.c.bf16 %v2620, %v2619
      %v2633 = vpack.c.bf16 %v2622, %v2621
      %v2634 = vpack.c.bf16 %v2624, %v2623
      %v2635 = vpack.c.bf16 %v2626, %v2625
      %v2636 = vpack.c.bf16 %v2628, %v2627
      %v2645 = vunpack.c.l.b16 %v2629
      %v2646 = vunpack.c.h.b16 %v2629
      %v2647 = vunpack.c.l.b16 %v2630
      %v2648 = vunpack.c.h.b16 %v2630
      %v2649 = vunpack.c.l.b16 %v2631
      %v2650 = vunpack.c.h.b16 %v2631
      %v2651 = vunpack.c.l.b16 %v2632
      %v2652 = vunpack.c.h.b16 %v2632
      %v2653 = vunpack.c.l.b16 %v2633
      %v2654 = vunpack.c.h.b16 %v2633
      %v2655 = vunpack.c.l.b16 %v2634
      %v2656 = vunpack.c.h.b16 %v2634
      %v2657 = vunpack.c.l.b16 %v2635
      %v2658 = vunpack.c.h.b16 %v2635
      %v2659 = vunpack.c.l.b16 %v2636
      %v2660 = vunpack.c.h.b16 %v2636
      %v2661 = vpack.c.b16 %v2645, %v2645
      %v2662 = vpack.c.b16 %v2646, %v2646
      %v2663 = vpack.c.b16 %v2647, %v2647
      %v2664 = vpack.c.b16 %v2648, %v2648
      %v2665 = vpack.c.b16 %v2649, %v2649
      %v2666 = vpack.c.b16 %v2650, %v2650
      %v2667 = vpack.c.b16 %v2651, %v2651
      %v2668 = vpack.c.b16 %v2652, %v2652
      %v2669 = vpack.c.b16 %v2653, %v2653
      %v2670 = vpack.c.b16 %v2654, %v2654
      %v2671 = vpack.c.b16 %v2655, %v2655
      %v2672 = vpack.c.b16 %v2656, %v2656
      %v2673 = vpack.c.b16 %v2657, %v2657
      %v2674 = vpack.c.b16 %v2658, %v2658
      %v2675 = vpack.c.b16 %v2659, %v2659
      %v2676 = vpack.c.b16 %v2660, %v2660
      %2693 = vst [vmem:[%s226] sm:$0xf] %v2661
      %2694 = vst [vmem:[%s226 + $0x4] sm:$0xf] %v2662
      %2695 = vst [vmem:[%s226 + $0x8] sm:$0xf] %v2663
      %2696 = vst [vmem:[%s226 + $0xc] sm:$0xf] %v2664
      %2697 = vst [vmem:[%s226 + $0x10] sm:$0xf] %v2665
      %2698 = vst [vmem:[%s226 + $0x14] sm:$0xf] %v2666
      %2699 = vst [vmem:[%s226 + $0x18] sm:$0xf] %v2667
      %2700 = vst [vmem:[%s226 + $0x1c] sm:$0xf] %v2668
      %2701 = vst [vmem:[%s226 + $0x20] sm:$0xf] %v2669
      %2702 = vst [vmem:[%s226 + $0x24] sm:$0xf] %v2670
      %2703 = vst [vmem:[%s226 + $0x28] sm:$0xf] %v2671
      %2704 = vst [vmem:[%s226 + $0x2c] sm:$0xf] %v2672
      %2705 = vst [vmem:[%s226 + $0x30] sm:$0xf] %v2673
      %2706 = vst [vmem:[%s226 + $0x34] sm:$0xf] %v2674
      %2707 = vst [vmem:[%s226 + $0x38] sm:$0xf] %v2675
      %2708 = vst [vmem:[%s226 + $0x3c] sm:$0xf] %v2676
      %s2709 = smul.u32 16, %s16
      %p2710 = scmp.lt.s32.totalorder %s2709, 31
      %s2711 = scalar_select %p2710, %s2709, 31
      %s2712 = smul.addr %s2711, 4
      %s2713 = scalar_lea.vmem %s5, %s2712
      // Predicated region
      $region41: #{ncf_forward.1} parent=39 // pred_check
        %p2714 = pneg %p144
      $region42: #{ncf_forward.1} parent=39 // pred_check_branch
        %2716 = sbr.rel (%p2714) target = $region44
      $region43: #{ncf_forward.1} parent=39 // pred_region
        %s2717 = smul.u32 16, %s16
      $region44: #{ncf_forward.1} parent=39 // pred_fallthru
        _
    $region40: #{ncf_forward.1} parent=5 // pred_fallthru
      _
    %p2718 = scmp.le.s32.totalorder 2, %s11
    // Predicated region
    $region45: #{ncf_forward.1} parent=5 // pred_check
      %p2719 = pneg %p2718
    $region46: #{ncf_forward.1} parent=5 // pred_check_branch
      %2721 = sbr.rel (%p2719) target = $region48
    $region47: #{ncf_forward.1} parent=5 // pred_region
      %s2722 = ssub.s32 %s11, 2
      // Predicated region
      $region49: #{ncf_forward.1} parent=47 // pred_check
        %p2723 = pneg %p150
      $region50: #{ncf_forward.1} parent=47 // pred_check_branch
        %2725 = sbr.rel (%p2723) target = $region52
      $region51: #{ncf_forward.1} parent=47 // pred_region
        %s2726 = smul.u32 16, %s17
        %p2727 = scmp.lt.s32.totalorder %s2726, 31
        %s2728 = scalar_select %p2727, %s2726, 31
        %s2729 = smul.addr %s2728, 4
        %s2730 = scalar_lea.vmem %s5, %s2729
      $region52: #{ncf_forward.1} parent=47 // pred_fallthru
        _
    $region48: #{ncf_forward.1} parent=5 // pred_fallthru
      _
  $region6: #{ncf_forward.1} parent=0 // loop_footer
    %s15 = sadd.s32 1, %s11
  $region7: #{ncf_forward.1} parent=0 // loop_footer_branch
    %10 = sbr.rel target = $region3
  $region8: #{ncf_forward.1} parent=0 // loop_exit
    _

</llo_original>
